<compile_context>
chip_gen: v7x
topology: tpu7x:2x2x1
jax: 0.10.0
libtpu: 0.0.40
codegen_flags: <defaults>
</compile_context>

<pallas_src>
import functools

import jax
import jax.numpy as jnp
from jax.experimental import pallas as pl
from jax.experimental.pallas import tpu as pltpu


# ----------------------------------------------------------------------------
# Transposed (lane-dense) fused matmul + bias kernel:
#   yT = act_out( W_T @ act_in(xT) + bT )
# W_T:[N,K] bf16, xT:[K,M], bT:[N,1] f32 -> yT:[N,M]
# Single full-extent block (K <= 288, M <= 512): no K grid axis, no accumulator,
# no padding; output last dim M is a multiple of 128 -> unmasked vector stores.
# ----------------------------------------------------------------------------
def _matmul_t_kernel(w_ref, x_ref, b_ref, o_ref, *, input_relu, output_relu):
    x = x_ref[...]
    if input_relu:
        x = jnp.maximum(x, 0)
    y = jnp.dot(w_ref[...], x.astype(w_ref.dtype),
                preferred_element_type=jnp.float32)       # bf16 MXU, f32 accumulate
    y = y + b_ref[...]
    if output_relu:
        y = jnp.maximum(y, 0.0)
    o_ref[...] = y.astype(o_ref.dtype)


def matmul_t(wT, xT, bT, *, input_relu=False, output_relu=False,
             out_dtype=jnp.bfloat16):
    """yT = act_out(W_T @ act_in(xT) + bT).  wT:[N,K] bf16, xT:[K,M], bT:[N,1] f32."""
    n, k = wT.shape
    k2, m = xT.shape
    assert k == k2 and bT.shape == (n, 1)

    kernel = functools.partial(_matmul_t_kernel,
                               input_relu=input_relu, output_relu=output_relu)
    return pl.pallas_call(
        kernel,
        out_shape=jax.ShapeDtypeStruct((n, m), out_dtype),
        grid_spec=pltpu.PrefetchScalarGridSpec(
            num_scalar_prefetch=0,
            grid=(1,),                                    # no M split: serial on 1-TC chips
            in_specs=[
                pl.BlockSpec((n, k), lambda i: (0, 0)),   # weight (full extent)
                pl.BlockSpec((k, m), lambda i: (0, 0)),   # activations (full extent)
                pl.BlockSpec((n, 1), lambda i: (0, 0)),   # bias
            ],
            out_specs=pl.BlockSpec((n, m), lambda i: (0, 0)),
        ),
        compiler_params=pltpu.CompilerParams(dimension_semantics=("arbitrary",)),
    )(wT, xT, bT)


# ----------------------------------------------------------------------------
# Fused stem1 + all-cells kernel (single invocation, fully unrolled):
#   s1 = Wstem1^T @ relu(patches(s0)) + b_stem1                    (ReLU -> Conv3x3)
#   for i in range(layers):
#       y = relu( Wc_i^T @ concat(relu(s0), relu(s1)) + bc_i )     (one K=2C dot)
#       s0, s1 = s1, y ; taps written at i == layers//3, 2*layers//3
# States live in vregs; all weights resident; outputs are lane-dense [C, M] f32.
# ----------------------------------------------------------------------------
def _stem1_cells_kernel(p_ref, s0_ref, ws1_ref, bs1_ref, wc_ref, bc_ref,
                        o0_ref, o1_ref, of_ref, *, layers, tap0, tap1):
    # stem1
    p = jnp.maximum(p_ref[...], 0).astype(ws1_ref.dtype)
    s1 = jnp.dot(ws1_ref[...], p, preferred_element_type=jnp.float32) + bs1_ref[...]
    s0 = s0_ref[...].astype(jnp.float32)

    # cells (unrolled; taps capture s0 AFTER the swap, matching the PyTorch loop)
    for i in range(layers):
        x_cat = jnp.concatenate(
            [jnp.maximum(s0, 0.0).astype(wc_ref.dtype),
             jnp.maximum(s1, 0.0).astype(wc_ref.dtype)], axis=0)      # [2C, M], sublane concat
        y = jnp.dot(wc_ref[i], x_cat, preferred_element_type=jnp.float32) + bc_ref[i]
        y = jnp.maximum(y, 0.0)
        s0, s1 = s1, y
        if i == tap0:
            o0_ref[...] = s0
        if i == tap1:
            o1_ref[...] = s0
    of_ref[...] = s1


def stem1_and_cells(s0_cf, ws1T, bs1, wcT, bc, *, layers):
    """s0_cf: [C, N, H, W] (bf16).  Returns three [C, N*H*W] f32 feature maps."""
    c, n, h, w = s0_cf.shape
    m = n * h * w

    # im2col patches for stem1 (3x3, stride 1, pad 1) in channels-first layout -> [9C, M].
    # TODO(synk): patch extraction stays as XLA strided slices + concat (tens of KiB);
    # moving it in-kernel as 9 shifted accumulating dots is not worth it at this size.
    p, ho, wo = _extract_patches_cf(s0_cf, ksize=3, stride=1, pad=1)
    assert (ho, wo) == (h, w)
    s0_flat = s0_cf.reshape(c, m)

    tap0, tap1 = layers // 3, 2 * layers // 3
    assert 0 <= tap0 < tap1 < layers, "need layers >= 3 for distinct tap outputs"

    kernel = functools.partial(_stem1_cells_kernel,
                               layers=layers, tap0=tap0, tap1=tap1)
    feat = jax.ShapeDtypeStruct((c, m), jnp.float32)

    def full(shape):
        return pl.BlockSpec(shape, lambda *args, _nd=len(shape): (0,) * _nd)

    o0, o1, of = pl.pallas_call(
        kernel,
        out_shape=(feat, feat, feat),
        grid_spec=pltpu.PrefetchScalarGridSpec(
            num_scalar_prefetch=0,
            grid=(1,),
            in_specs=[
                full(p.shape),       # stem1 patches      [9C, M]  bf16
                full((c, m)),        # s0                 [C, M]   bf16
                full(ws1T.shape),    # stem1 weight^T     [C, 9C]  bf16
                full(bs1.shape),     # stem1 bias         [C, 1]   f32
                full(wcT.shape),     # cell weights^T     [L, C, 2C] bf16 (fully resident)
                full(bc.shape),      # cell biases        [L, C, 1]  f32
            ],
            out_specs=(full((c, m)), full((c, m)), full((c, m))),
        ),
        compiler_params=pltpu.CompilerParams(dimension_semantics=("arbitrary",)),
    )(p, s0_flat, ws1T, bs1, wcT, bc)
    return o0, o1, of


# ----------------------------------------------------------------------------
# im2col in channels-first layout: [C, N, H, W] -> [k*k*C, N*Ho*Wo]
# K order is (kh, kw, cin); synthetic weights below are generated in the same order.
# ----------------------------------------------------------------------------
def _extract_patches_cf(x_cf, ksize, stride, pad):
    c, n, h, w = x_cf.shape
    xp = jnp.pad(x_cf, ((0, 0), (0, 0), (pad, pad), (pad, pad)))
    ho = (h + 2 * pad - ksize) // stride + 1
    wo = (w + 2 * pad - ksize) // stride + 1
    cols = []
    for di in range(ksize):
        for dj in range(ksize):
            cols.append(xp[:, :, di:di + stride * ho:stride, dj:dj + stride * wo:stride])
    patches = jnp.concatenate(cols, axis=0)                # [k*k*C, N, Ho, Wo]
    return patches.reshape(ksize * ksize * c, n * ho * wo), ho, wo


# ----------------------------------------------------------------------------
# Synthetic submodule parameters (deterministic).  Weights are stored once in the
# transposed matmul layout [Cout, K] (K order = (kh, kw, cin)) in bf16; biases f32.
# TODO(synk): real PyTorch weights [Cout, Cin, kh, kw] would need a permute to
# (kh, kw, Cin) before flattening into this layout.
# ----------------------------------------------------------------------------
def make_params(key, c_in=3, c=32, layers=6):
    keys = iter(jax.random.split(key, 8))

    def w(shape, scale=0.1, dtype=jnp.bfloat16):
        v = scale * jax.random.normal(next(keys), shape, dtype=jnp.float32)
        return v.astype(dtype)

    return {
        # stem0: conv3x3 s2 (c_in -> c//2) + ReLU ; conv3x3 s2 (c//2 -> c)
        "stem0_w1": w((c // 2, 3 * 3 * c_in)),
        "stem0_b1": w((c // 2, 1), 0.05, jnp.float32),
        "stem0_w2": w((c, 3 * 3 * (c // 2))),
        "stem0_b2": w((c, 1), 0.05, jnp.float32),
        # stem1: ReLU + conv3x3 s1 (c -> c)
        "stem1_w": w((c, 3 * 3 * c)),
        "stem1_b": w((c, 1), 0.05, jnp.float32),
        # cells: fused per-cell weight [C, 2C] = [W0^T | W1^T] -> single K=2C dot
        "cells_w": w((layers, c, 2 * c)),
        "cells_b": w((layers, c, 1), 0.05, jnp.float32),
    }


# ----------------------------------------------------------------------------
# FeatureExtractor forward
# ----------------------------------------------------------------------------
def feature_extractor_forward(x_nchw, params, layers):
    n = x_nchw.shape[0]
    # NCHW -> channels-first [C, N, H, W] (internal lane-dense layout)
    x_cf = jnp.transpose(x_nchw, (1, 0, 2, 3))

    # stem0 conv1 (stride 2) + ReLU
    p1, h1, w1 = _extract_patches_cf(x_cf, ksize=3, stride=2, pad=1)
    s = matmul_t(params["stem0_w1"], p1, params["stem0_b1"], output_relu=True)
    s_cf = s.reshape(s.shape[0], n, h1, w1)

    # stem0 conv2 (stride 2), no activation
    p2, h2, w2 = _extract_patches_cf(s_cf, ksize=3, stride=2, pad=1)
    s0 = matmul_t(params["stem0_w2"], p2, params["stem0_b2"])
    c = s0.shape[0]
    s0_cf = s0.reshape(c, n, h2, w2)

    # stem1 + all cells fused into one pallas_call; taps at layers//3, 2*layers//3, final s1
    o0, o1, of = stem1_and_cells(s0_cf, params["stem1_w"], params["stem1_b"],
                                 params["cells_w"], params["cells_b"], layers=layers)

    # [C, M] -> NCHW at the boundary (matches PyTorch output convention)
    return [jnp.transpose(o.reshape(c, n, h2, w2), (1, 0, 2, 3)) for o in (o0, o1, of)]


if __name__ == "__main__":
    key = jax.random.PRNGKey(0)
    k_in, k_par = jax.random.split(key)

    LAYERS = 6
    C = 32
    x = jax.random.normal(k_in, (2, 3, 32, 32), dtype=jnp.float32)   # NCHW input
    params = make_params(k_par, c_in=3, c=C, layers=LAYERS)

    fwd = jax.jit(functools.partial(feature_extractor_forward, layers=LAYERS))
    outs = fwd(x, params)
    outs = jax.block_until_ready(outs)

    assert len(outs) == 3
    assert all(o.shape == (2, C, 8, 8) for o in outs)
    assert all(bool(jnp.all(jnp.isfinite(o))) for o in outs)
    print("KERNEL_OK")
</pallas_src>

<mosaic_0001>
module attributes {stable_mosaic.version = 11 : i64} {
  func.func @_matmul_t_kernel(%arg0: i32, %arg1: memref<16x27xbf16, #tpu.memory_space<vmem>>, %arg2: memref<27x512xf32, #tpu.memory_space<vmem>>, %arg3: memref<16x1xf32, #tpu.memory_space<vmem>>, %arg4: memref<16x512xbf16, #tpu.memory_space<vmem>>) attributes {dimension_semantics = [#tpu.dimension_semantics<arbitrary>], iteration_bounds = array<i64: 1>, scalar_prefetch = 0 : i64, scratch_operands = 0 : i64, tpu.core_type = #tpu.core_type<tc>, window_params = [{pipeline_mode = #tpu.pipeline_mode<synchronous>, transform_indices = @transform_0, window_bounds = array<i64: 16, 27>}, {pipeline_mode = #tpu.pipeline_mode<synchronous>, transform_indices = @transform_1, window_bounds = array<i64: 27, 512>}, {pipeline_mode = #tpu.pipeline_mode<synchronous>, transform_indices = @transform_2, window_bounds = array<i64: 16, 1>}, {pipeline_mode = #tpu.pipeline_mode<synchronous>, transform_indices = @transform_3, window_bounds = array<i64: 16, 512>}]} {
    %c0 = arith.constant 0 : index
    %c0_0 = arith.constant 0 : index
    %0 = vector.load %arg2[%c0, %c0_0] : memref<27x512xf32, #tpu.memory_space<vmem>>, vector<27x512xf32>
    %c0_1 = arith.constant 0 : index
    %c0_2 = arith.constant 0 : index
    %1 = vector.load %arg1[%c0_1, %c0_2] : memref<16x27xbf16, #tpu.memory_space<vmem>>, vector<16x27xbf16>
    %2 = arith.truncf %0 : vector<27x512xf32> to vector<27x512xbf16>
    %cst = arith.constant dense<0.000000e+00> : vector<16x512xf32>
    %3 = tpu.matmul %1, %2, %cst {dimension_numbers = #tpu.dot_dimension_numbers<[1], [0], [0], [1], [0, 0, 1, 1], [], []>} : vector<16x27xbf16>, vector<27x512xbf16>, vector<16x512xf32> -> vector<16x512xf32>
    %c0_3 = arith.constant 0 : index
    %c0_4 = arith.constant 0 : index
    %4 = vector.load %arg3[%c0_3, %c0_4] : memref<16x1xf32, #tpu.memory_space<vmem>>, vector<16x1xf32>
    %5 = vector.broadcast %4 : vector<16x1xf32> to vector<16x512xf32>
    %6 = arith.addf %3, %5 : vector<16x512xf32>
    %cst_5 = arith.constant 0.000000e+00 : f32
    %7 = vector.broadcast %cst_5 : f32 to vector<16x512xf32>
    %8 = arith.maximumf %6, %7 : vector<16x512xf32>
    %9 = arith.truncf %8 : vector<16x512xf32> to vector<16x512xbf16>
    %c0_6 = arith.constant 0 : index
    %c0_7 = arith.constant 0 : index
    %10 = vector.load %arg4[%c0_6, %c0_7] : memref<16x512xbf16, #tpu.memory_space<vmem>>, vector<16x512xbf16>
    tpu.vector_store %arg4[%c0_6, %c0_7], %9 {strides = array<i32>} : memref<16x512xbf16, #tpu.memory_space<vmem>>, vector<16x512xbf16>,
    return
  }
  func.func @transform_0(%arg0: i32) -> (i32, i32) {
    %c0_i32 = arith.constant 0 : i32
    %c0_i32_0 = arith.constant 0 : i32
    %c0_i32_1 = arith.constant 0 : i32
    return %c0_i32, %c0_i32_0 : i32, i32
  }
  func.func @transform_1(%arg0: i32) -> (i32, i32) {
    %c0_i32 = arith.constant 0 : i32
    %c0_i32_0 = arith.constant 0 : i32
    %c0_i32_1 = arith.constant 0 : i32
    return %c0_i32, %c0_i32_0 : i32, i32
  }
  func.func @transform_2(%arg0: i32) -> (i32, i32) {
    %c0_i32 = arith.constant 0 : i32
    %c0_i32_0 = arith.constant 0 : i32
    %c0_i32_1 = arith.constant 0 : i32
    return %c0_i32, %c0_i32_0 : i32, i32
  }
  func.func @transform_3(%arg0: i32) -> (i32, i32) {
    %c0_i32 = arith.constant 0 : i32
    %c0_i32_0 = arith.constant 0 : i32
    %c0_i32_1 = arith.constant 0 : i32
    return %c0_i32, %c0_i32_0 : i32, i32
  }
}

module attributes {stable_mosaic.version = 11 : i64} {
  func.func @_matmul_t_kernel(%arg0: i32, %arg1: memref<32x144xbf16, #tpu.memory_space<vmem>>, %arg2: memref<144x128xbf16, #tpu.memory_space<vmem>>, %arg3: memref<32x1xf32, #tpu.memory_space<vmem>>, %arg4: memref<32x128xbf16, #tpu.memory_space<vmem>>) attributes {dimension_semantics = [#tpu.dimension_semantics<arbitrary>], iteration_bounds = array<i64: 1>, scalar_prefetch = 0 : i64, scratch_operands = 0 : i64, tpu.core_type = #tpu.core_type<tc>, window_params = [{pipeline_mode = #tpu.pipeline_mode<synchronous>, transform_indices = @transform_0, window_bounds = array<i64: 32, 144>}, {pipeline_mode = #tpu.pipeline_mode<synchronous>, transform_indices = @transform_1, window_bounds = array<i64: 144, 128>}, {pipeline_mode = #tpu.pipeline_mode<synchronous>, transform_indices = @transform_2, window_bounds = array<i64: 32, 1>}, {pipeline_mode = #tpu.pipeline_mode<synchronous>, transform_indices = @transform_3, window_bounds = array<i64: 32, 128>}]} {
    %c0 = arith.constant 0 : index
    %c0_0 = arith.constant 0 : index
    %0 = vector.load %arg2[%c0, %c0_0] : memref<144x128xbf16, #tpu.memory_space<vmem>>, vector<144x128xbf16>
    %c0_1 = arith.constant 0 : index
    %c0_2 = arith.constant 0 : index
    %1 = vector.load %arg1[%c0_1, %c0_2] : memref<32x144xbf16, #tpu.memory_space<vmem>>, vector<32x144xbf16>
    %cst = arith.constant dense<0.000000e+00> : vector<32x128xf32>
    %2 = tpu.matmul %1, %0, %cst {dimension_numbers = #tpu.dot_dimension_numbers<[1], [0], [0], [1], [0, 0, 1, 1], [], []>} : vector<32x144xbf16>, vector<144x128xbf16>, vector<32x128xf32> -> vector<32x128xf32>
    %c0_3 = arith.constant 0 : index
    %c0_4 = arith.constant 0 : index
    %3 = vector.load %arg3[%c0_3, %c0_4] : memref<32x1xf32, #tpu.memory_space<vmem>>, vector<32x1xf32>
    %4 = vector.broadcast %3 : vector<32x1xf32> to vector<32x128xf32>
    %5 = arith.addf %2, %4 : vector<32x128xf32>
    %6 = arith.truncf %5 : vector<32x128xf32> to vector<32x128xbf16>
    %c0_5 = arith.constant 0 : index
    %c0_6 = arith.constant 0 : index
    %7 = vector.load %arg4[%c0_5, %c0_6] : memref<32x128xbf16, #tpu.memory_space<vmem>>, vector<32x128xbf16>
    tpu.vector_store %arg4[%c0_5, %c0_6], %6 {strides = array<i32>} : memref<32x128xbf16, #tpu.memory_space<vmem>>, vector<32x128xbf16>,
    return
  }
  func.func @transform_0(%arg0: i32) -> (i32, i32) {
    %c0_i32 = arith.constant 0 : i32
    %c0_i32_0 = arith.constant 0 : i32
    %c0_i32_1 = arith.constant 0 : i32
    return %c0_i32, %c0_i32_0 : i32, i32
  }
  func.func @transform_1(%arg0: i32) -> (i32, i32) {
    %c0_i32 = arith.constant 0 : i32
    %c0_i32_0 = arith.constant 0 : i32
    %c0_i32_1 = arith.constant 0 : i32
    return %c0_i32, %c0_i32_0 : i32, i32
  }
  func.func @transform_2(%arg0: i32) -> (i32, i32) {
    %c0_i32 = arith.constant 0 : i32
    %c0_i32_0 = arith.constant 0 : i32
    %c0_i32_1 = arith.constant 0 : i32
    return %c0_i32, %c0_i32_0 : i32, i32
  }
  func.func @transform_3(%arg0: i32) -> (i32, i32) {
    %c0_i32 = arith.constant 0 : i32
    %c0_i32_0 = arith.constant 0 : i32
    %c0_i32_1 = arith.constant 0 : i32
    return %c0_i32, %c0_i32_0 : i32, i32
  }
}

module attributes {stable_mosaic.version = 11 : i64} {
  func.func @_stem1_cells_kernel(%arg0: i32, %arg1: memref<288x128xbf16, #tpu.memory_space<vmem>>, %arg2: memref<32x128xbf16, #tpu.memory_space<vmem>>, %arg3: memref<32x288xbf16, #tpu.memory_space<vmem>>, %arg4: memref<32x1xf32, #tpu.memory_space<vmem>>, %arg5: memref<6x32x64xbf16, #tpu.memory_space<vmem>>, %arg6: memref<6x32x1xf32, #tpu.memory_space<vmem>>, %arg7: memref<32x128xf32, #tpu.memory_space<vmem>>, %arg8: memref<32x128xf32, #tpu.memory_space<vmem>>, %arg9: memref<32x128xf32, #tpu.memory_space<vmem>>) attributes {dimension_semantics = [#tpu.dimension_semantics<arbitrary>], iteration_bounds = array<i64: 1>, scalar_prefetch = 0 : i64, scratch_operands = 0 : i64, tpu.core_type = #tpu.core_type<tc>, window_params = [{pipeline_mode = #tpu.pipeline_mode<synchronous>, transform_indices = @transform_0, window_bounds = array<i64: 288, 128>}, {pipeline_mode = #tpu.pipeline_mode<synchronous>, transform_indices = @transform_1, window_bounds = array<i64: 32, 128>}, {pipeline_mode = #tpu.pipeline_mode<synchronous>, transform_indices = @transform_2, window_bounds = array<i64: 32, 288>}, {pipeline_mode = #tpu.pipeline_mode<synchronous>, transform_indices = @transform_3, window_bounds = array<i64: 32, 1>}, {pipeline_mode = #tpu.pipeline_mode<synchronous>, transform_indices = @transform_4, window_bounds = array<i64: 6, 32, 64>}, {pipeline_mode = #tpu.pipeline_mode<synchronous>, transform_indices = @transform_5, window_bounds = array<i64: 6, 32, 1>}, {pipeline_mode = #tpu.pipeline_mode<synchronous>, transform_indices = @transform_6, window_bounds = array<i64: 32, 128>}, {pipeline_mode = #tpu.pipeline_mode<synchronous>, transform_indices = @transform_7, window_bounds = array<i64: 32, 128>}, {pipeline_mode = #tpu.pipeline_mode<synchronous>, transform_indices = @transform_8, window_bounds = array<i64: 32, 128>}]} {
    %c0 = arith.constant 0 : index
    %c0_0 = arith.constant 0 : index
    %0 = vector.load %arg1[%c0, %c0_0] : memref<288x128xbf16, #tpu.memory_space<vmem>>, vector<288x128xbf16>
    %cst = arith.constant 0.000000e+00 : bf16
    %1 = vector.broadcast %cst : bf16 to vector<288x128xbf16>
    %2 = arith.maximumf %0, %1 : vector<288x128xbf16>
    %c0_1 = arith.constant 0 : index
    %c0_2 = arith.constant 0 : index
    %3 = vector.load %arg3[%c0_1, %c0_2] : memref<32x288xbf16, #tpu.memory_space<vmem>>, vector<32x288xbf16>
    %cst_3 = arith.constant dense<0.000000e+00> : vector<32x128xf32>
    %4 = tpu.matmul %3, %2, %cst_3 {dimension_numbers = #tpu.dot_dimension_numbers<[1], [0], [0], [1], [0, 0, 1, 1], [], []>} : vector<32x288xbf16>, vector<288x128xbf16>, vector<32x128xf32> -> vector<32x128xf32>
    %c0_4 = arith.constant 0 : index
    %c0_5 = arith.constant 0 : index
    %5 = vector.load %arg4[%c0_4, %c0_5] : memref<32x1xf32, #tpu.memory_space<vmem>>, vector<32x1xf32>
    %6 = vector.broadcast %5 : vector<32x1xf32> to vector<32x128xf32>
    %7 = arith.addf %4, %6 : vector<32x128xf32>
    %c0_6 = arith.constant 0 : index
    %c0_7 = arith.constant 0 : index
    %8 = vector.load %arg2[%c0_6, %c0_7] : memref<32x128xbf16, #tpu.memory_space<vmem>>, vector<32x128xbf16>
    %9 = arith.extf %8 : vector<32x128xbf16> to vector<32x128xf32>
    %cst_8 = arith.constant 0.000000e+00 : f32
    %10 = vector.broadcast %cst_8 : f32 to vector<32x128xf32>
    %11 = arith.maximumf %9, %10 : vector<32x128xf32>
    %12 = arith.truncf %11 : vector<32x128xf32> to vector<32x128xbf16>
    %cst_9 = arith.constant 0.000000e+00 : f32
    %13 = vector.broadcast %cst_9 : f32 to vector<32x128xf32>
    %14 = arith.maximumf %7, %13 : vector<32x128xf32>
    %15 = arith.truncf %14 : vector<32x128xf32> to vector<32x128xbf16>
    %16 = tpu.concatenate %12, %15 in 0 : vector<32x128xbf16>, vector<32x128xbf16> -> vector<64x128xbf16>
    %c0_10 = arith.constant 0 : index
    %c0_11 = arith.constant 0 : index
    %c0_12 = arith.constant 0 : index
    %17 = vector.load %arg5[%c0_10, %c0_11, %c0_12] : memref<6x32x64xbf16, #tpu.memory_space<vmem>>, vector<1x32x64xbf16>
    %18 = vector.shape_cast %17 : vector<1x32x64xbf16> to vector<32x64xbf16>
    %cst_13 = arith.constant dense<0.000000e+00> : vector<32x128xf32>
    %19 = tpu.matmul %18, %16, %cst_13 {dimension_numbers = #tpu.dot_dimension_numbers<[1], [0], [0], [1], [0, 0, 1, 1], [], []>} : vector<32x64xbf16>, vector<64x128xbf16>, vector<32x128xf32> -> vector<32x128xf32>
    %c0_14 = arith.constant 0 : index
    %c0_15 = arith.constant 0 : index
    %c0_16 = arith.constant 0 : index
    %20 = vector.load %arg6[%c0_14, %c0_15, %c0_16] : memref<6x32x1xf32, #tpu.memory_space<vmem>>, vector<1x32x1xf32>
    %21 = vector.shape_cast %20 : vector<1x32x1xf32> to vector<32x1xf32>
    %22 = vector.broadcast %21 : vector<32x1xf32> to vector<32x128xf32>
    %23 = arith.addf %19, %22 : vector<32x128xf32>
    %cst_17 = arith.constant 0.000000e+00 : f32
    %24 = vector.broadcast %cst_17 : f32 to vector<32x128xf32>
    %25 = arith.maximumf %23, %24 : vector<32x128xf32>
    %cst_18 = arith.constant 0.000000e+00 : f32
    %26 = vector.broadcast %cst_18 : f32 to vector<32x128xf32>
    %27 = arith.maximumf %7, %26 : vector<32x128xf32>
    %28 = arith.truncf %27 : vector<32x128xf32> to vector<32x128xbf16>
    %cst_19 = arith.constant 0.000000e+00 : f32
    %29 = vector.broadcast %cst_19 : f32 to vector<32x128xf32>
    %30 = arith.maximumf %25, %29 : vector<32x128xf32>
    %31 = arith.truncf %30 : vector<32x128xf32> to vector<32x128xbf16>
    %32 = tpu.concatenate %28, %31 in 0 : vector<32x128xbf16>, vector<32x128xbf16> -> vector<64x128xbf16>
    %c1 = arith.constant 1 : index
    %c0_20 = arith.constant 0 : index
    %c0_21 = arith.constant 0 : index
    %33 = vector.load %arg5[%c1, %c0_20, %c0_21] : memref<6x32x64xbf16, #tpu.memory_space<vmem>>, vector<1x32x64xbf16>
    %34 = vector.shape_cast %33 : vector<1x32x64xbf16> to vector<32x64xbf16>
    %cst_22 = arith.constant dense<0.000000e+00> : vector<32x128xf32>
    %35 = tpu.matmul %34, %32, %cst_22 {dimension_numbers = #tpu.dot_dimension_numbers<[1], [0], [0], [1], [0, 0, 1, 1], [], []>} : vector<32x64xbf16>, vector<64x128xbf16>, vector<32x128xf32> -> vector<32x128xf32>
    %c1_23 = arith.constant 1 : index
    %c0_24 = arith.constant 0 : index
    %c0_25 = arith.constant 0 : index
    %36 = vector.load %arg6[%c1_23, %c0_24, %c0_25] : memref<6x32x1xf32, #tpu.memory_space<vmem>>, vector<1x32x1xf32>
    %37 = vector.shape_cast %36 : vector<1x32x1xf32> to vector<32x1xf32>
    %38 = vector.broadcast %37 : vector<32x1xf32> to vector<32x128xf32>
    %39 = arith.addf %35, %38 : vector<32x128xf32>
    %cst_26 = arith.constant 0.000000e+00 : f32
    %40 = vector.broadcast %cst_26 : f32 to vector<32x128xf32>
    %41 = arith.maximumf %39, %40 : vector<32x128xf32>
    %cst_27 = arith.constant 0.000000e+00 : f32
    %42 = vector.broadcast %cst_27 : f32 to vector<32x128xf32>
    %43 = arith.maximumf %25, %42 : vector<32x128xf32>
    %44 = arith.truncf %43 : vector<32x128xf32> to vector<32x128xbf16>
    %cst_28 = arith.constant 0.000000e+00 : f32
    %45 = vector.broadcast %cst_28 : f32 to vector<32x128xf32>
    %46 = arith.maximumf %41, %45 : vector<32x128xf32>
    %47 = arith.truncf %46 : vector<32x128xf32> to vector<32x128xbf16>
    %48 = tpu.concatenate %44, %47 in 0 : vector<32x128xbf16>, vector<32x128xbf16> -> vector<64x128xbf16>
    %c2 = arith.constant 2 : index
    %c0_29 = arith.constant 0 : index
    %c0_30 = arith.constant 0 : index
    %49 = vector.load %arg5[%c2, %c0_29, %c0_30] : memref<6x32x64xbf16, #tpu.memory_space<vmem>>, vector<1x32x64xbf16>
    %50 = vector.shape_cast %49 : vector<1x32x64xbf16> to vector<32x64xbf16>
    %cst_31 = arith.constant dense<0.000000e+00> : vector<32x128xf32>
    %51 = tpu.matmul %50, %48, %cst_31 {dimension_numbers = #tpu.dot_dimension_numbers<[1], [0], [0], [1], [0, 0, 1, 1], [], []>} : vector<32x64xbf16>, vector<64x128xbf16>, vector<32x128xf32> -> vector<32x128xf32>
    %c2_32 = arith.constant 2 : index
    %c0_33 = arith.constant 0 : index
    %c0_34 = arith.constant 0 : index
    %52 = vector.load %arg6[%c2_32, %c0_33, %c0_34] : memref<6x32x1xf32, #tpu.memory_space<vmem>>, vector<1x32x1xf32>
    %53 = vector.shape_cast %52 : vector<1x32x1xf32> to vector<32x1xf32>
    %54 = vector.broadcast %53 : vector<32x1xf32> to vector<32x128xf32>
    %55 = arith.addf %51, %54 : vector<32x128xf32>
    %cst_35 = arith.constant 0.000000e+00 : f32
    %56 = vector.broadcast %cst_35 : f32 to vector<32x128xf32>
    %57 = arith.maximumf %55, %56 : vector<32x128xf32>
    %c0_36 = arith.constant 0 : index
    %c0_37 = arith.constant 0 : index
    %58 = vector.load %arg7[%c0_36, %c0_37] : memref<32x128xf32, #tpu.memory_space<vmem>>, vector<32x128xf32>
    tpu.vector_store %arg7[%c0_36, %c0_37], %41 {strides = array<i32>} : memref<32x128xf32, #tpu.memory_space<vmem>>, vector<32x128xf32>,
    %cst_38 = arith.constant 0.000000e+00 : f32
    %59 = vector.broadcast %cst_38 : f32 to vector<32x128xf32>
    %60 = arith.maximumf %41, %59 : vector<32x128xf32>
    %61 = arith.truncf %60 : vector<32x128xf32> to vector<32x128xbf16>
    %cst_39 = arith.constant 0.000000e+00 : f32
    %62 = vector.broadcast %cst_39 : f32 to vector<32x128xf32>
    %63 = arith.maximumf %57, %62 : vector<32x128xf32>
    %64 = arith.truncf %63 : vector<32x128xf32> to vector<32x128xbf16>
    %65 = tpu.concatenate %61, %64 in 0 : vector<32x128xbf16>, vector<32x128xbf16> -> vector<64x128xbf16>
    %c3 = arith.constant 3 : index
    %c0_40 = arith.constant 0 : index
    %c0_41 = arith.constant 0 : index
    %66 = vector.load %arg5[%c3, %c0_40, %c0_41] : memref<6x32x64xbf16, #tpu.memory_space<vmem>>, vector<1x32x64xbf16>
    %67 = vector.shape_cast %66 : vector<1x32x64xbf16> to vector<32x64xbf16>
    %cst_42 = arith.constant dense<0.000000e+00> : vector<32x128xf32>
    %68 = tpu.matmul %67, %65, %cst_42 {dimension_numbers = #tpu.dot_dimension_numbers<[1], [0], [0], [1], [0, 0, 1, 1], [], []>} : vector<32x64xbf16>, vector<64x128xbf16>, vector<32x128xf32> -> vector<32x128xf32>
    %c3_43 = arith.constant 3 : index
    %c0_44 = arith.constant 0 : index
    %c0_45 = arith.constant 0 : index
    %69 = vector.load %arg6[%c3_43, %c0_44, %c0_45] : memref<6x32x1xf32, #tpu.memory_space<vmem>>, vector<1x32x1xf32>
    %70 = vector.shape_cast %69 : vector<1x32x1xf32> to vector<32x1xf32>
    %71 = vector.broadcast %70 : vector<32x1xf32> to vector<32x128xf32>
    %72 = arith.addf %68, %71 : vector<32x128xf32>
    %cst_46 = arith.constant 0.000000e+00 : f32
    %73 = vector.broadcast %cst_46 : f32 to vector<32x128xf32>
    %74 = arith.maximumf %72, %73 : vector<32x128xf32>
    %cst_47 = arith.constant 0.000000e+00 : f32
    %75 = vector.broadcast %cst_47 : f32 to vector<32x128xf32>
    %76 = arith.maximumf %57, %75 : vector<32x128xf32>
    %77 = arith.truncf %76 : vector<32x128xf32> to vector<32x128xbf16>
    %cst_48 = arith.constant 0.000000e+00 : f32
    %78 = vector.broadcast %cst_48 : f32 to vector<32x128xf32>
    %79 = arith.maximumf %74, %78 : vector<32x128xf32>
    %80 = arith.truncf %79 : vector<32x128xf32> to vector<32x128xbf16>
    %81 = tpu.concatenate %77, %80 in 0 : vector<32x128xbf16>, vector<32x128xbf16> -> vector<64x128xbf16>
    %c4 = arith.constant 4 : index
    %c0_49 = arith.constant 0 : index
    %c0_50 = arith.constant 0 : index
    %82 = vector.load %arg5[%c4, %c0_49, %c0_50] : memref<6x32x64xbf16, #tpu.memory_space<vmem>>, vector<1x32x64xbf16>
    %83 = vector.shape_cast %82 : vector<1x32x64xbf16> to vector<32x64xbf16>
    %cst_51 = arith.constant dense<0.000000e+00> : vector<32x128xf32>
    %84 = tpu.matmul %83, %81, %cst_51 {dimension_numbers = #tpu.dot_dimension_numbers<[1], [0], [0], [1], [0, 0, 1, 1], [], []>} : vector<32x64xbf16>, vector<64x128xbf16>, vector<32x128xf32> -> vector<32x128xf32>
    %c4_52 = arith.constant 4 : index
    %c0_53 = arith.constant 0 : index
    %c0_54 = arith.constant 0 : index
    %85 = vector.load %arg6[%c4_52, %c0_53, %c0_54] : memref<6x32x1xf32, #tpu.memory_space<vmem>>, vector<1x32x1xf32>
    %86 = vector.shape_cast %85 : vector<1x32x1xf32> to vector<32x1xf32>
    %87 = vector.broadcast %86 : vector<32x1xf32> to vector<32x128xf32>
    %88 = arith.addf %84, %87 : vector<32x128xf32>
    %cst_55 = arith.constant 0.000000e+00 : f32
    %89 = vector.broadcast %cst_55 : f32 to vector<32x128xf32>
    %90 = arith.maximumf %88, %89 : vector<32x128xf32>
    %c0_56 = arith.constant 0 : index
    %c0_57 = arith.constant 0 : index
    %91 = vector.load %arg8[%c0_56, %c0_57] : memref<32x128xf32, #tpu.memory_space<vmem>>, vector<32x128xf32>
    tpu.vector_store %arg8[%c0_56, %c0_57], %74 {strides = array<i32>} : memref<32x128xf32, #tpu.memory_space<vmem>>, vector<32x128xf32>,
    %cst_58 = arith.constant 0.000000e+00 : f32
    %92 = vector.broadcast %cst_58 : f32 to vector<32x128xf32>
    %93 = arith.maximumf %74, %92 : vector<32x128xf32>
    %94 = arith.truncf %93 : vector<32x128xf32> to vector<32x128xbf16>
    %cst_59 = arith.constant 0.000000e+00 : f32
    %95 = vector.broadcast %cst_59 : f32 to vector<32x128xf32>
    %96 = arith.maximumf %90, %95 : vector<32x128xf32>
    %97 = arith.truncf %96 : vector<32x128xf32> to vector<32x128xbf16>
    %98 = tpu.concatenate %94, %97 in 0 : vector<32x128xbf16>, vector<32x128xbf16> -> vector<64x128xbf16>
    %c5 = arith.constant 5 : index
    %c0_60 = arith.constant 0 : index
    %c0_61 = arith.constant 0 : index
    %99 = vector.load %arg5[%c5, %c0_60, %c0_61] : memref<6x32x64xbf16, #tpu.memory_space<vmem>>, vector<1x32x64xbf16>
    %100 = vector.shape_cast %99 : vector<1x32x64xbf16> to vector<32x64xbf16>
    %cst_62 = arith.constant dense<0.000000e+00> : vector<32x128xf32>
    %101 = tpu.matmul %100, %98, %cst_62 {dimension_numbers = #tpu.dot_dimension_numbers<[1], [0], [0], [1], [0, 0, 1, 1], [], []>} : vector<32x64xbf16>, vector<64x128xbf16>, vector<32x128xf32> -> vector<32x128xf32>
    %c5_63 = arith.constant 5 : index
    %c0_64 = arith.constant 0 : index
    %c0_65 = arith.constant 0 : index
    %102 = vector.load %arg6[%c5_63, %c0_64, %c0_65] : memref<6x32x1xf32, #tpu.memory_space<vmem>>, vector<1x32x1xf32>
    %103 = vector.shape_cast %102 : vector<1x32x1xf32> to vector<32x1xf32>
    %104 = vector.broadcast %103 : vector<32x1xf32> to vector<32x128xf32>
    %105 = arith.addf %101, %104 : vector<32x128xf32>
    %cst_66 = arith.constant 0.000000e+00 : f32
    %106 = vector.broadcast %cst_66 : f32 to vector<32x128xf32>
    %107 = arith.maximumf %105, %106 : vector<32x128xf32>
    %c0_67 = arith.constant 0 : index
    %c0_68 = arith.constant 0 : index
    %108 = vector.load %arg9[%c0_67, %c0_68] : memref<32x128xf32, #tpu.memory_space<vmem>>, vector<32x128xf32>
    tpu.vector_store %arg9[%c0_67, %c0_68], %107 {strides = array<i32>} : memref<32x128xf32, #tpu.memory_space<vmem>>, vector<32x128xf32>,
    return
  }
  func.func @transform_0(%arg0: i32) -> (i32, i32) {
    %c0_i32 = arith.constant 0 : i32
    %c0_i32_0 = arith.constant 0 : i32
    %c0_i32_1 = arith.constant 0 : i32
    return %c0_i32, %c0_i32_0 : i32, i32
  }
  func.func @transform_1(%arg0: i32) -> (i32, i32) {
    %c0_i32 = arith.constant 0 : i32
    %c0_i32_0 = arith.constant 0 : i32
    %c0_i32_1 = arith.constant 0 : i32
    return %c0_i32, %c0_i32_0 : i32, i32
  }
  func.func @transform_2(%arg0: i32) -> (i32, i32) {
    %c0_i32 = arith.constant 0 : i32
    %c0_i32_0 = arith.constant 0 : i32
    %c0_i32_1 = arith.constant 0 : i32
    return %c0_i32, %c0_i32_0 : i32, i32
  }
  func.func @transform_3(%arg0: i32) -> (i32, i32) {
    %c0_i32 = arith.constant 0 : i32
    %c0_i32_0 = arith.constant 0 : i32
    %c0_i32_1 = arith.constant 0 : i32
    return %c0_i32, %c0_i32_0 : i32, i32
  }
  func.func @transform_4(%arg0: i32) -> (i32, i32, i32) {
    %c0_i32 = arith.constant 0 : i32
    %c0_i32_0 = arith.constant 0 : i32
    %c0_i32_1 = arith.constant 0 : i32
    %c0_i32_2 = arith.constant 0 : i32
    return %c0_i32, %c0_i32_0, %c0_i32_1 : i32, i32, i32
  }
  func.func @transform_5(%arg0: i32) -> (i32, i32, i32) {
    %c0_i32 = arith.constant 0 : i32
    %c0_i32_0 = arith.constant 0 : i32
    %c0_i32_1 = arith.constant 0 : i32
    %c0_i32_2 = arith.constant 0 : i32
    return %c0_i32, %c0_i32_0, %c0_i32_1 : i32, i32, i32
  }
  func.func @transform_6(%arg0: i32) -> (i32, i32) {
    %c0_i32 = arith.constant 0 : i32
    %c0_i32_0 = arith.constant 0 : i32
    %c0_i32_1 = arith.constant 0 : i32
    return %c0_i32, %c0_i32_0 : i32, i32
  }
  func.func @transform_7(%arg0: i32) -> (i32, i32) {
    %c0_i32 = arith.constant 0 : i32
    %c0_i32_0 = arith.constant 0 : i32
    %c0_i32_1 = arith.constant 0 : i32
    return %c0_i32, %c0_i32_0 : i32, i32
  }
  func.func @transform_8(%arg0: i32) -> (i32, i32) {
    %c0_i32 = arith.constant 0 : i32
    %c0_i32_0 = arith.constant 0 : i32
    %c0_i32_1 = arith.constant 0 : i32
    return %c0_i32, %c0_i32_0 : i32, i32
  }
}

</mosaic_0001>

<llo_original>
// kernel: feature_extractor_forward.3
$region0: #{feature_extractor_forward.3}
  #allocation0 [shape = 'u32[]', space=smem, size = 0x4, offset = 0x4, fixed_abs, tag = 'smem constant byte address 0x4 - core index']
  #allocation1 [shape = 'u32[144,128]{1,0:T(1,128)}', space=vmem, size = 0x12000, scoped, tag = 'internal scratch']
  %s0 = inlined_call_operand.vmem [shape: bf16[16,27], index: 0, kind: input, shape index: {}]
  %s1 = inlined_call_operand.vmem [shape: f32[27,512], index: 1, kind: input, shape index: {}]
  %s2 = inlined_call_operand.vmem [shape: f32[16,1], index: 2, kind: input, shape index: {}]
  %s3 = inlined_call_operand.vmem [shape: bf16[16,512], index: 3, kind: output, shape index: {}]
  %s4 = sld [smem:[#allocation0]]
  $region22: #{feature_extractor_forward.3} parent=0
    _
  %s6 = ssub.s32 1, %s4
  %s7 = scalar_select 0, %s6, %s4
  // Predicated region
  $region2: #{feature_extractor_forward.3} parent=0 // pred_check
    _
  $region3: #{feature_extractor_forward.3} parent=0 // pred_check_branch
    %9 = sbr.rel (0) target = $region5
  $region4: #{feature_extractor_forward.3} parent=0 // pred_region
    _
  $region5: #{feature_extractor_forward.3} parent=0 // pred_fallthru
    _
  // Predicated region
  $region6: #{feature_extractor_forward.3} parent=0 // pred_check
    _
  $region7: #{feature_extractor_forward.3} parent=0 // pred_check_branch
    %11 = sbr.rel (0) target = $region9
  $region8: #{feature_extractor_forward.3} parent=0 // pred_region
    _
  $region9: #{feature_extractor_forward.3} parent=0 // pred_fallthru
    _
  // Predicated region
  $region10: #{feature_extractor_forward.3} parent=0 // pred_check
    _
  $region11: #{feature_extractor_forward.3} parent=0 // pred_check_branch
    %13 = sbr.rel (0) target = $region13
  $region12: #{feature_extractor_forward.3} parent=0 // pred_region
    _
  $region13: #{feature_extractor_forward.3} parent=0 // pred_fallthru
    _
  %v15 = vld [vmem:[%s1] sm:$0xff]
  %v16 = vld [vmem:[%s1 + $0x8] sm:$0xff]
  %v17 = vld [vmem:[%s1 + $0x10] sm:$0xff]
  %v18 = vld [vmem:[%s1 + $0x18] sm:$0xff]
  %v19 = vld [vmem:[%s1 + $0x20] sm:$0xff]
  %v20 = vld [vmem:[%s1 + $0x28] sm:$0xff]
  %v21 = vld [vmem:[%s1 + $0x30] sm:$0xff]
  %v22 = vld [vmem:[%s1 + $0x38] sm:$0xff]
  %v23 = vld [vmem:[%s1 + $0x40] sm:$0xff]
  %v24 = vld [vmem:[%s1 + $0x48] sm:$0xff]
  %v25 = vld [vmem:[%s1 + $0x50] sm:$0xff]
  %v26 = vld [vmem:[%s1 + $0x58] sm:$0xff]
  %v27 = vld [vmem:[%s1 + $0x60] sm:$0x7]
  %v28 = vld [vmem:[%s1 + $0x68] sm:$0x7]
  %v29 = vld [vmem:[%s1 + $0x70] sm:$0x7]
  %v30 = vld [vmem:[%s1 + $0x78] sm:$0x7]
  %v31 = vld [vmem:[%s0] sm:$0xf]
  %v32 = vld [vmem:[%s0 + $0x4] sm:$0xf]
  %v33 = vpack.c.bf16 %v19, %v15
  %v34 = vpack.c.bf16 %v20, %v16
  %v35 = vpack.c.bf16 %v21, %v17
  %v36 = vpack.c.bf16 %v22, %v18
  %v37 = vpack.c.bf16 %v27, %v23
  %v38 = vpack.c.bf16 %v28, %v24
  %v39 = vpack.c.bf16 %v29, %v25
  %v40 = vpack.c.bf16 %v30, %v26
  %v41 = vld [vmem:[%s2] sm:$0xff]
  %v42 = vld [vmem:[%s2 + $0x8] sm:$0xff]
  %44 = vset.pattern.permute.xlu0 0
  %45 = vperm.xlu0 %44, %v41
  %v46 = vpop.permute.xlu0 %45
  %49 = vset.pattern.permute.xlu0 0
  %50 = vperm.xlu0 %49, %v42
  %v51 = vpop.permute.xlu0 %50
  %v55 = vunpack.c.l.b16 %v31
  %v56 = vunpack.c.l.b16 %v32
  %v57 = vpack.c.b16 %v56, %v55
  %vm58 = vcmask 220160
  %v60 = vsel %vm58, %v57, 0
  %vm62 = vcmask 1044480
  %vm63 = vcmask 1045504
  %v64 = vsel %vm62, 4294967295, 65535
  %v65 = vsel %vm63, %v64, 0
  %v67 = vand.u32 %v37, %v65
  %v70 = vand.u32 %v38, %v65
  %v73 = vand.u32 %v39, %v65
  %v76 = vand.u32 %v40, %v65
  %78 = vmatprep.subr.bf16.mxu0 %v34
  %79 = vmatpush1.bf16.msra.mxu0 %v33
  %80 = vmatprep.subr.bf16.mxu0 %v70
  %81 = vmatpush1.bf16.msra.mxu0 %v67
  %82 = vmatprep.subr.bf16.mxu0 0
  %83 = vmatpush1.bf16.msra.mxu0 0
  %84 = vmatprep.subr.bf16.mxu0 0
  %85 = vmatpush1.bf16.msra.mxu0 0
  %86 = vmatprep.subr.bf16.mxu0 0
  %87 = vmatpush1.bf16.msra.mxu0 0
  %88 = vmatprep.subr.bf16.mxu0 0
  %89 = vmatpush1.bf16.msra.mxu0 0
  %90 = vmatprep.subr.bf16.mxu0 0
  %91 = vmatpush1.bf16.msra.mxu0 0
  %92 = vmatprep.subr.bf16.mxu0 0
  %93 = vmatpush1.bf16.msra.mxu0 0
  %94 = vmatprep.subr.bf16.mxu0 0
  %95 = vmatpush1.bf16.msra.mxu0 0
  %96 = vmatprep.subr.bf16.mxu0 0
  %97 = vmatpush1.bf16.msra.mxu0 0
  %98 = vmatprep.subr.bf16.mxu0 0
  %99 = vmatpush1.bf16.msra.mxu0 0
  %100 = vmatprep.subr.bf16.mxu0 0
  %101 = vmatpush1.bf16.msra.mxu0 0
  %102 = vmatprep.subr.bf16.mxu0 0
  %103 = vmatpush1.bf16.msra.mxu0 0
  %104 = vmatprep.subr.bf16.mxu0 0
  %105 = vmatpush1.bf16.msra.mxu0 0
  %106 = vmatprep.subr.bf16.mxu0 0
  %107 = vmatpush1.bf16.msra.mxu0 0
  %108 = vmatprep.subr.bf16.mxu0 0
  %109 = vmatpush1.bf16.msra.mxu0 0
  %110 = vmatprep.mubr.bf16.mxu0 0
  %111 = vmatmul.mubr.bf16.gmra.mrb[0].mxu0 %v60
  %v112 = vpop.f32.mrb[0].mxu0
  %v113 = vadd.f32 %v46, %v112
  %v114 = vpop.f32.mrb[0].mxu0
  %v115 = vadd.f32 %v46, %v114
  %v116 = vpop.f32.mrb[0].mxu0
  %v117 = vadd.f32 %v51, %v116
  %v118 = vpop.f32.mrb[0].mxu0
  %v119 = vadd.f32 %v51, %v118
  %120 = vdwg.mxu0
  %121 = vmatprep.subr.bf16.mxu0 %v36
  %122 = vmatpush1.bf16.msra.mxu0 %v35
  %123 = vmatprep.subr.bf16.mxu0 %v76
  %124 = vmatpush1.bf16.msra.mxu0 %v73
  %125 = vmatprep.subr.bf16.mxu0 0
  %126 = vmatpush1.bf16.msra.mxu0 0
  %127 = vmatprep.subr.bf16.mxu0 0
  %128 = vmatpush1.bf16.msra.mxu0 0
  %129 = vmatprep.subr.bf16.mxu0 0
  %130 = vmatpush1.bf16.msra.mxu0 0
  %131 = vmatprep.subr.bf16.mxu0 0
  %132 = vmatpush1.bf16.msra.mxu0 0
  %133 = vmatprep.subr.bf16.mxu0 0
  %134 = vmatpush1.bf16.msra.mxu0 0
  %135 = vmatprep.subr.bf16.mxu0 0
  %136 = vmatpush1.bf16.msra.mxu0 0
  %137 = vmatprep.subr.bf16.mxu0 0
  %138 = vmatpush1.bf16.msra.mxu0 0
  %139 = vmatprep.subr.bf16.mxu0 0
  %140 = vmatpush1.bf16.msra.mxu0 0
  %141 = vmatprep.subr.bf16.mxu0 0
  %142 = vmatpush1.bf16.msra.mxu0 0
  %143 = vmatprep.subr.bf16.mxu0 0
  %144 = vmatpush1.bf16.msra.mxu0 0
  %145 = vmatprep.subr.bf16.mxu0 0
  %146 = vmatpush1.bf16.msra.mxu0 0
  %147 = vmatprep.subr.bf16.mxu0 0
  %148 = vmatpush1.bf16.msra.mxu0 0
  %149 = vmatprep.subr.bf16.mxu0 0
  %150 = vmatpush1.bf16.msra.mxu0 0
  %151 = vmatprep.subr.bf16.mxu0 0
  %152 = vmatpush1.bf16.msra.mxu0 0
  %153 = vmatprep.mubr.bf16.mxu0 0
  %154 = vmatmul.mubr.bf16.gmra.mrb[0].mxu0 %v60
  %v155 = vpop.f32.mrb[0].mxu0
  %v156 = vadd.f32 %v46, %v155
  %v157 = vpop.f32.mrb[0].mxu0
  %v158 = vadd.f32 %v46, %v157
  %v159 = vpop.f32.mrb[0].mxu0
  %v160 = vadd.f32 %v51, %v159
  %v161 = vpop.f32.mrb[0].mxu0
  %v162 = vadd.f32 %v51, %v161
  %163 = vdwg.mxu0
  %v164 = vmax.f32 %v113, 0.0
  %v165 = vmax.f32 %v115, 0.0
  %v166 = vmax.f32 %v156, 0.0
  %v167 = vmax.f32 %v158, 0.0
  %v168 = vmax.f32 %v117, 0.0
  %v169 = vmax.f32 %v119, 0.0
  %v170 = vmax.f32 %v160, 0.0
  %v171 = vmax.f32 %v162, 0.0
  %v172 = vpack.c.bf16 %v168, %v164
  %v173 = vpack.c.bf16 %v169, %v165
  %v174 = vpack.c.bf16 %v170, %v166
  %v175 = vpack.c.bf16 %v171, %v167
  %v180 = vunpack.c.l.b16 %v172
  %v181 = vunpack.c.l.b16 %v173
  %v182 = vunpack.c.l.b16 %v174
  %v183 = vunpack.c.l.b16 %v175
  %v184 = vunpack.c.h.b16 %v172
  %v185 = vunpack.c.h.b16 %v173
  %v186 = vunpack.c.h.b16 %v174
  %v187 = vunpack.c.h.b16 %v175
  %v188 = vpack.c.b16 %v181, %v180
  %v189 = vpack.c.b16 %v183, %v182
  %v190 = vpack.c.b16 %v185, %v184
  %v191 = vpack.c.b16 %v187, %v186
  %196 = vst [vmem:[%s3] sm:$0xff] %v188
  %197 = vst [vmem:[%s3 + $0x8] sm:$0xff] %v189
  %198 = vst [vmem:[%s3 + $0x10] sm:$0xff] %v190
  %199 = vst [vmem:[%s3 + $0x18] sm:$0xff] %v191
  // Predicated region
  $region14: #{feature_extractor_forward.3} parent=0 // pred_check
    _
  $region15: #{feature_extractor_forward.3} parent=0 // pred_check_branch
    %201 = sbr.rel (0) target = $region17
  $region16: #{feature_extractor_forward.3} parent=0 // pred_region
    _
  $region17: #{feature_extractor_forward.3} parent=0 // pred_fallthru
    _
  // Predicated region
  $region18: #{feature_extractor_forward.3} parent=0 // pred_check
    _
  $region19: #{feature_extractor_forward.3} parent=0 // pred_check_branch
    %203 = sbr.rel (0) target = $region21
  $region20: #{feature_extractor_forward.3} parent=0 // pred_region
    _
  $region21: #{feature_extractor_forward.3} parent=0 // pred_fallthru
    _

// kernel: feature_extractor_forward.4
$region0: #{feature_extractor_forward.4}
  #allocation0 [shape = 'u32[]', space=smem, size = 0x4, offset = 0x4, fixed_abs, tag = 'smem constant byte address 0x4 - core index']
  #allocation1 [shape = 'u32[144,128]{1,0:T(1,128)}', space=vmem, size = 0x12000, scoped, tag = 'internal scratch']
  %s0 = inlined_call_operand.vmem [shape: bf16[32,144], index: 0, kind: input, shape index: {}]
  %s1 = inlined_call_operand.vmem [shape: bf16[144,128], index: 1, kind: input, shape index: {}]
  %s2 = inlined_call_operand.vmem [shape: f32[32,1], index: 2, kind: input, shape index: {}]
  %s3 = inlined_call_operand.vmem [shape: bf16[32,128], index: 3, kind: output, shape index: {}]
  %s4 = sld [smem:[#allocation0]]
  $region22: #{feature_extractor_forward.4} parent=0
    _
  %s6 = ssub.s32 1, %s4
  %s7 = scalar_select 0, %s6, %s4
  // Predicated region
  $region2: #{feature_extractor_forward.4} parent=0 // pred_check
    _
  $region3: #{feature_extractor_forward.4} parent=0 // pred_check_branch
    %9 = sbr.rel (0) target = $region5
  $region4: #{feature_extractor_forward.4} parent=0 // pred_region
    _
  $region5: #{feature_extractor_forward.4} parent=0 // pred_fallthru
    _
  // Predicated region
  $region6: #{feature_extractor_forward.4} parent=0 // pred_check
    _
  $region7: #{feature_extractor_forward.4} parent=0 // pred_check_branch
    %11 = sbr.rel (0) target = $region9
  $region8: #{feature_extractor_forward.4} parent=0 // pred_region
    _
  $region9: #{feature_extractor_forward.4} parent=0 // pred_fallthru
    _
  // Predicated region
  $region10: #{feature_extractor_forward.4} parent=0 // pred_check
    _
  $region11: #{feature_extractor_forward.4} parent=0 // pred_check_branch
    %13 = sbr.rel (0) target = $region13
  $region12: #{feature_extractor_forward.4} parent=0 // pred_region
    _
  $region13: #{feature_extractor_forward.4} parent=0 // pred_fallthru
    _
  %v15 = vld [vmem:[%s1] sm:$0xf]
  %v16 = vld [vmem:[%s1 + $0x4] sm:$0xf]
  %v17 = vld [vmem:[%s1 + $0x8] sm:$0xf]
  %v18 = vld [vmem:[%s1 + $0xc] sm:$0xf]
  %v19 = vld [vmem:[%s1 + $0x10] sm:$0xf]
  %v20 = vld [vmem:[%s1 + $0x14] sm:$0xf]
  %v21 = vld [vmem:[%s1 + $0x18] sm:$0xf]
  %v22 = vld [vmem:[%s1 + $0x1c] sm:$0xf]
  %v23 = vld [vmem:[%s1 + $0x20] sm:$0xf]
  %v24 = vld [vmem:[%s1 + $0x24] sm:$0xf]
  %v25 = vld [vmem:[%s1 + $0x28] sm:$0xf]
  %v26 = vld [vmem:[%s1 + $0x2c] sm:$0xf]
  %v27 = vld [vmem:[%s1 + $0x30] sm:$0xf]
  %v28 = vld [vmem:[%s1 + $0x34] sm:$0xf]
  %v29 = vld [vmem:[%s1 + $0x38] sm:$0xf]
  %v30 = vld [vmem:[%s1 + $0x3c] sm:$0xf]
  %v31 = vld [vmem:[%s1 + $0x40] sm:$0xf]
  %v32 = vld [vmem:[%s1 + $0x44] sm:$0xf]
  %v33 = vld [vmem:[%s0] sm:$0xff]
  %v34 = vld [vmem:[%s0 + $0x8] sm:$0xff]
  %v35 = vld [vmem:[%s0 + $0x10] sm:$0xff]
  %v36 = vld [vmem:[%s0 + $0x18] sm:$0xff]
  %v37 = vld [vmem:[%s2] sm:$0xff]
  %v38 = vld [vmem:[%s2 + $0x8] sm:$0xff]
  %v39 = vld [vmem:[%s2 + $0x10] sm:$0xff]
  %v40 = vld [vmem:[%s2 + $0x18] sm:$0xff]
  %42 = vset.pattern.permute.xlu0 0
  %43 = vperm.xlu0 %42, %v37
  %v44 = vpop.permute.xlu0 %43
  %47 = vset.pattern.permute.xlu0 0
  %48 = vperm.xlu0 %47, %v38
  %v49 = vpop.permute.xlu0 %48
  %52 = vset.pattern.permute.xlu0 0
  %53 = vperm.xlu0 %52, %v39
  %v54 = vpop.permute.xlu0 %53
  %57 = vset.pattern.permute.xlu0 0
  %58 = vperm.xlu0 %57, %v40
  %v59 = vpop.permute.xlu0 %58
  %v65 = vunpack.c.l.b16 %v33
  %v66 = vunpack.c.h.b16 %v33
  %v67 = vunpack.c.l.b16 %v34
  %v68 = vunpack.c.h.b16 %v34
  %v69 = vunpack.c.l.b16 %v35
  %v70 = vunpack.c.h.b16 %v35
  %v71 = vunpack.c.l.b16 %v36
  %v72 = vunpack.c.h.b16 %v36
  %v73 = vpack.c.b16 %v67, %v65
  %v74 = vpack.c.b16 %v68, %v66
  %v75 = vpack.c.b16 %v71, %v69
  %v76 = vpack.c.b16 %v72, %v70
  %v97 = vunpack.c.l.b16 %v15
  %v98 = vunpack.c.l.b16 %v16
  %v99 = vunpack.c.l.b16 %v17
  %v100 = vunpack.c.l.b16 %v18
  %v101 = vunpack.c.l.b16 %v19
  %v102 = vunpack.c.l.b16 %v20
  %v103 = vunpack.c.l.b16 %v21
  %v104 = vunpack.c.l.b16 %v22
  %v105 = vunpack.c.l.b16 %v23
  %v106 = vunpack.c.l.b16 %v24
  %v107 = vunpack.c.l.b16 %v25
  %v108 = vunpack.c.l.b16 %v26
  %v109 = vunpack.c.l.b16 %v27
  %v110 = vunpack.c.l.b16 %v28
  %v111 = vunpack.c.l.b16 %v29
  %v112 = vunpack.c.l.b16 %v30
  %v113 = vunpack.c.l.b16 %v31
  %v114 = vunpack.c.l.b16 %v32
  %v115 = vpack.c.b16 %v98, %v97
  %v116 = vpack.c.b16 %v100, %v99
  %v117 = vpack.c.b16 %v102, %v101
  %v118 = vpack.c.b16 %v104, %v103
  %v119 = vpack.c.b16 %v106, %v105
  %v120 = vpack.c.b16 %v108, %v107
  %v121 = vpack.c.b16 %v110, %v109
  %v122 = vpack.c.b16 %v112, %v111
  %v123 = vpack.c.b16 %v114, %v113
  %vm133 = vcmask 130048
  %v135 = vsel %vm133, %v74, 0
  %v138 = vsel %vm133, %v76, 0
  %140 = vmatprep.subr.bf16.mxu0 0
  %141 = vmatpush1.bf16.msra.mxu0 %v115
  %142 = vmatprep.subr.bf16.mxu0 0
  %143 = vmatpush1.bf16.msra.mxu0 %v116
  %144 = vmatprep.subr.bf16.mxu0 0
  %145 = vmatpush1.bf16.msra.mxu0 %v117
  %146 = vmatprep.subr.bf16.mxu0 0
  %147 = vmatpush1.bf16.msra.mxu0 %v118
  %148 = vmatprep.subr.bf16.mxu0 0
  %149 = vmatpush1.bf16.msra.mxu0 %v119
  %150 = vmatprep.subr.bf16.mxu0 0
  %151 = vmatpush1.bf16.msra.mxu0 %v120
  %152 = vmatprep.subr.bf16.mxu0 0
  %153 = vmatpush1.bf16.msra.mxu0 %v121
  %154 = vmatprep.subr.bf16.mxu0 0
  %155 = vmatpush1.bf16.msra.mxu0 %v122
  %156 = vmatprep.subr.bf16.mxu0 0
  %157 = vmatpush1.bf16.msra.mxu0 %v123
  %158 = vmatprep.subr.bf16.mxu0 0
  %159 = vmatpush1.bf16.msra.mxu0 0
  %160 = vmatprep.subr.bf16.mxu0 0
  %161 = vmatpush1.bf16.msra.mxu0 0
  %162 = vmatprep.subr.bf16.mxu0 0
  %163 = vmatpush1.bf16.msra.mxu0 0
  %164 = vmatprep.subr.bf16.mxu0 0
  %165 = vmatpush1.bf16.msra.mxu0 0
  %166 = vmatprep.subr.bf16.mxu0 0
  %167 = vmatpush1.bf16.msra.mxu0 0
  %168 = vmatprep.subr.bf16.mxu0 0
  %169 = vmatpush1.bf16.msra.mxu0 0
  %170 = vmatprep.subr.bf16.mxu0 0
  %171 = vmatpush1.bf16.msra.mxu0 0
  %172 = vmatprep.mubr.bf16.mxu0 %v135
  %173 = vmatmul.mubr.bf16.gmra.mrb[0].mxu0 %v73
  %v174 = vpop.f32.mrb[0].mxu0
  %v175 = vadd.f32 %v44, %v174
  %v176 = vpop.f32.mrb[0].mxu0
  %v177 = vpop.f32.mrb[0].mxu0
  %v178 = vadd.f32 %v49, %v177
  %v179 = vpop.f32.mrb[0].mxu0
  %180 = vmatprep.mubr.bf16.mxu0 %v138
  %181 = vmatmul.mubr.bf16.gmra.mrb[0].mxu0 %v75
  %v182 = vpop.f32.mrb[0].mxu0
  %v183 = vadd.f32 %v54, %v182
  %v184 = vpop.f32.mrb[0].mxu0
  %v185 = vpop.f32.mrb[0].mxu0
  %v186 = vadd.f32 %v59, %v185
  %v187 = vpop.f32.mrb[0].mxu0
  %188 = vdwg.mxu0
  %v189 = vpack.c.bf16 %v178, %v175
  %v190 = vpack.c.bf16 %v186, %v183
  %v193 = vunpack.c.l.b16 %v189
  %v194 = vunpack.c.h.b16 %v189
  %v195 = vunpack.c.l.b16 %v190
  %v196 = vunpack.c.h.b16 %v190
  %v197 = vpack.c.b16 %v193, %v193
  %v198 = vpack.c.b16 %v194, %v194
  %v199 = vpack.c.b16 %v195, %v195
  %v200 = vpack.c.b16 %v196, %v196
  %205 = vst [vmem:[%s3] sm:$0xf] %v197
  %206 = vst [vmem:[%s3 + $0x4] sm:$0xf] %v198
  %207 = vst [vmem:[%s3 + $0x8] sm:$0xf] %v199
  %208 = vst [vmem:[%s3 + $0xc] sm:$0xf] %v200
  // Predicated region
  $region14: #{feature_extractor_forward.4} parent=0 // pred_check
    _
  $region15: #{feature_extractor_forward.4} parent=0 // pred_check_branch
    %210 = sbr.rel (0) target = $region17
  $region16: #{feature_extractor_forward.4} parent=0 // pred_region
    _
  $region17: #{feature_extractor_forward.4} parent=0 // pred_fallthru
    _
  // Predicated region
  $region18: #{feature_extractor_forward.4} parent=0 // pred_check
    _
  $region19: #{feature_extractor_forward.4} parent=0 // pred_check_branch
    %212 = sbr.rel (0) target = $region21
  $region20: #{feature_extractor_forward.4} parent=0 // pred_region
    _
  $region21: #{feature_extractor_forward.4} parent=0 // pred_fallthru
    _

// kernel: feature_extractor_forward.5
$region0: #{feature_extractor_forward.5}
  #allocation0 [shape = 'u32[]', space=smem, size = 0x4, offset = 0x4, fixed_abs, tag = 'smem constant byte address 0x4 - core index']
  #allocation1 [shape = 'u32[144,128]{1,0:T(1,128)}', space=vmem, size = 0x12000, scoped, tag = 'internal scratch']
  %s0 = inlined_call_operand.vmem [shape: bf16[288,128], index: 0, kind: input, shape index: {}]
  %s1 = inlined_call_operand.vmem [shape: bf16[32,128], index: 1, kind: input, shape index: {}]
  %s2 = inlined_call_operand.vmem [shape: bf16[32,288], index: 2, kind: input, shape index: {}]
  %s3 = inlined_call_operand.vmem [shape: f32[32,1], index: 3, kind: input, shape index: {}]
  %s4 = inlined_call_operand.vmem [shape: bf16[6,32,64], index: 4, kind: input, shape index: {}]
  %s5 = inlined_call_operand.vmem [shape: f32[6,32,1], index: 5, kind: input, shape index: {}]
  %s6 = inlined_call_operand.vmem [shape: f32[32,128], index: 6, kind: output, shape index: {0}]
  %s7 = inlined_call_operand.vmem [shape: f32[32,128], index: 7, kind: output, shape index: {1}]
  %s8 = inlined_call_operand.vmem [shape: f32[32,128], index: 8, kind: output, shape index: {2}]
  %9 = xla_tuple %s6, %s7, %s8
  %s10 = sld [smem:[#allocation0]]
  $region50: #{feature_extractor_forward.5} parent=0
    _
  %s12 = ssub.s32 1, %s10
  %s13 = scalar_select 0, %s12, %s10
  // Predicated region
  $region2: #{feature_extractor_forward.5} parent=0 // pred_check
    _
  $region3: #{feature_extractor_forward.5} parent=0 // pred_check_branch
    %15 = sbr.rel (0) target = $region5
  $region4: #{feature_extractor_forward.5} parent=0 // pred_region
    _
  $region5: #{feature_extractor_forward.5} parent=0 // pred_fallthru
    _
  // Predicated region
  $region6: #{feature_extractor_forward.5} parent=0 // pred_check
    _
  $region7: #{feature_extractor_forward.5} parent=0 // pred_check_branch
    %17 = sbr.rel (0) target = $region9
  $region8: #{feature_extractor_forward.5} parent=0 // pred_region
    _
  $region9: #{feature_extractor_forward.5} parent=0 // pred_fallthru
    _
  // Predicated region
  $region10: #{feature_extractor_forward.5} parent=0 // pred_check
    _
  $region11: #{feature_extractor_forward.5} parent=0 // pred_check_branch
    %19 = sbr.rel (0) target = $region13
  $region12: #{feature_extractor_forward.5} parent=0 // pred_region
    _
  $region13: #{feature_extractor_forward.5} parent=0 // pred_fallthru
    _
  // Predicated region
  $region14: #{feature_extractor_forward.5} parent=0 // pred_check
    _
  $region15: #{feature_extractor_forward.5} parent=0 // pred_check_branch
    %21 = sbr.rel (0) target = $region17
  $region16: #{feature_extractor_forward.5} parent=0 // pred_region
    _
  $region17: #{feature_extractor_forward.5} parent=0 // pred_fallthru
    _
  // Predicated region
  $region18: #{feature_extractor_forward.5} parent=0 // pred_check
    _
  $region19: #{feature_extractor_forward.5} parent=0 // pred_check_branch
    %23 = sbr.rel (0) target = $region21
  $region20: #{feature_extractor_forward.5} parent=0 // pred_region
    _
  $region21: #{feature_extractor_forward.5} parent=0 // pred_fallthru
    _
  // Predicated region
  $region22: #{feature_extractor_forward.5} parent=0 // pred_check
    _
  $region23: #{feature_extractor_forward.5} parent=0 // pred_check_branch
    %25 = sbr.rel (0) target = $region25
  $region24: #{feature_extractor_forward.5} parent=0 // pred_region
    _
  $region25: #{feature_extractor_forward.5} parent=0 // pred_fallthru
    _
  %v27 = vld [vmem:[%s0] sm:$0xf]
  %v28 = vld [vmem:[%s0 + $0x4] sm:$0xf]
  %v29 = vld [vmem:[%s0 + $0x8] sm:$0xf]
  %v30 = vld [vmem:[%s0 + $0xc] sm:$0xf]
  %v31 = vld [vmem:[%s0 + $0x10] sm:$0xf]
  %v32 = vld [vmem:[%s0 + $0x14] sm:$0xf]
  %v33 = vld [vmem:[%s0 + $0x18] sm:$0xf]
  %v34 = vld [vmem:[%s0 + $0x1c] sm:$0xf]
  %v35 = vld [vmem:[%s0 + $0x20] sm:$0xf]
  %v36 = vld [vmem:[%s0 + $0x24] sm:$0xf]
  %v37 = vld [vmem:[%s0 + $0x28] sm:$0xf]
  %v38 = vld [vmem:[%s0 + $0x2c] sm:$0xf]
  %v39 = vld [vmem:[%s0 + $0x30] sm:$0xf]
  %v40 = vld [vmem:[%s0 + $0x34] sm:$0xf]
  %v41 = vld [vmem:[%s0 + $0x38] sm:$0xf]
  %v42 = vld [vmem:[%s0 + $0x3c] sm:$0xf]
  %v43 = vld [vmem:[%s0 + $0x40] sm:$0xf]
  %v44 = vld [vmem:[%s0 + $0x44] sm:$0xf]
  %v45 = vld [vmem:[%s0 + $0x48] sm:$0xf]
  %v46 = vld [vmem:[%s0 + $0x4c] sm:$0xf]
  %v47 = vld [vmem:[%s0 + $0x50] sm:$0xf]
  %v48 = vld [vmem:[%s0 + $0x54] sm:$0xf]
  %v49 = vld [vmem:[%s0 + $0x58] sm:$0xf]
  %v50 = vld [vmem:[%s0 + $0x5c] sm:$0xf]
  %v51 = vld [vmem:[%s0 + $0x60] sm:$0xf]
  %v52 = vld [vmem:[%s0 + $0x64] sm:$0xf]
  %v53 = vld [vmem:[%s0 + $0x68] sm:$0xf]
  %v54 = vld [vmem:[%s0 + $0x6c] sm:$0xf]
  %v55 = vld [vmem:[%s0 + $0x70] sm:$0xf]
  %v56 = vld [vmem:[%s0 + $0x74] sm:$0xf]
  %v57 = vld [vmem:[%s0 + $0x78] sm:$0xf]
  %v58 = vld [vmem:[%s0 + $0x7c] sm:$0xf]
  %v59 = vld [vmem:[%s0 + $0x80] sm:$0xf]
  %v60 = vld [vmem:[%s0 + $0x84] sm:$0xf]
  %v61 = vld [vmem:[%s0 + $0x88] sm:$0xf]
  %v62 = vld [vmem:[%s0 + $0x8c] sm:$0xf]
  %v63 = vmax.bf16 %v27, 0
  %v64 = vmax.bf16 %v28, 0
  %v65 = vmax.bf16 %v29, 0
  %v66 = vmax.bf16 %v30, 0
  %v67 = vmax.bf16 %v31, 0
  %v68 = vmax.bf16 %v32, 0
  %v69 = vmax.bf16 %v33, 0
  %v70 = vmax.bf16 %v34, 0
  %v71 = vmax.bf16 %v35, 0
  %v72 = vmax.bf16 %v36, 0
  %v73 = vmax.bf16 %v37, 0
  %v74 = vmax.bf16 %v38, 0
  %v75 = vmax.bf16 %v39, 0
  %v76 = vmax.bf16 %v40, 0
  %v77 = vmax.bf16 %v41, 0
  %v78 = vmax.bf16 %v42, 0
  %v79 = vmax.bf16 %v43, 0
  %v80 = vmax.bf16 %v44, 0
  %v81 = vmax.bf16 %v45, 0
  %v82 = vmax.bf16 %v46, 0
  %v83 = vmax.bf16 %v47, 0
  %v84 = vmax.bf16 %v48, 0
  %v85 = vmax.bf16 %v49, 0
  %v86 = vmax.bf16 %v50, 0
  %v87 = vmax.bf16 %v51, 0
  %v88 = vmax.bf16 %v52, 0
  %v89 = vmax.bf16 %v53, 0
  %v90 = vmax.bf16 %v54, 0
  %v91 = vmax.bf16 %v55, 0
  %v92 = vmax.bf16 %v56, 0
  %v93 = vmax.bf16 %v57, 0
  %v94 = vmax.bf16 %v58, 0
  %v95 = vmax.bf16 %v59, 0
  %v96 = vmax.bf16 %v60, 0
  %v97 = vmax.bf16 %v61, 0
  %v98 = vmax.bf16 %v62, 0
  %v99 = vld [vmem:[%s2] sm:$0xff]
  %v100 = vld [vmem:[%s2 + $0x8] sm:$0xf]
  %v101 = vld [vmem:[%s2 + $0xc] sm:$0xff]
  %v102 = vld [vmem:[%s2 + $0x14] sm:$0xf]
  %v103 = vld [vmem:[%s2 + $0x18] sm:$0xff]
  %v104 = vld [vmem:[%s2 + $0x20] sm:$0xf]
  %v105 = vld [vmem:[%s2 + $0x24] sm:$0xff]
  %v106 = vld [vmem:[%s2 + $0x2c] sm:$0xf]
  %v107 = vld [vmem:[%s3] sm:$0xff]
  %v108 = vld [vmem:[%s3 + $0x8] sm:$0xff]
  %v109 = vld [vmem:[%s3 + $0x10] sm:$0xff]
  %v110 = vld [vmem:[%s3 + $0x18] sm:$0xff]
  %112 = vset.pattern.permute.xlu0 0
  %113 = vperm.xlu0 %112, %v107
  %v114 = vpop.permute.xlu0 %113
  %117 = vset.pattern.permute.xlu0 0
  %118 = vperm.xlu0 %117, %v108
  %v119 = vpop.permute.xlu0 %118
  %122 = vset.pattern.permute.xlu0 0
  %123 = vperm.xlu0 %122, %v109
  %v124 = vpop.permute.xlu0 %123
  %127 = vset.pattern.permute.xlu0 0
  %128 = vperm.xlu0 %127, %v110
  %v129 = vpop.permute.xlu0 %128
  %v139 = vunpack.c.l.b16 %v99
  %v140 = vunpack.c.h.b16 %v99
  %v141 = vunpack.c.l.b16 %v100
  %v142 = vunpack.c.l.b16 %v101
  %v143 = vunpack.c.h.b16 %v101
  %v144 = vunpack.c.l.b16 %v102
  %v145 = vunpack.c.l.b16 %v103
  %v146 = vunpack.c.h.b16 %v103
  %v147 = vunpack.c.l.b16 %v104
  %v148 = vunpack.c.l.b16 %v105
  %v149 = vunpack.c.h.b16 %v105
  %v150 = vunpack.c.l.b16 %v106
  %v151 = vpack.c.b16 %v142, %v139
  %v152 = vpack.c.b16 %v143, %v140
  %v153 = vpack.c.b16 %v144, %v141
  %v154 = vpack.c.b16 %v148, %v145
  %v155 = vpack.c.b16 %v149, %v146
  %v156 = vpack.c.b16 %v150, %v147
  %v197 = vunpack.c.l.b16 %v63
  %v198 = vunpack.c.l.b16 %v64
  %v199 = vunpack.c.l.b16 %v65
  %v200 = vunpack.c.l.b16 %v66
  %v201 = vunpack.c.l.b16 %v67
  %v202 = vunpack.c.l.b16 %v68
  %v203 = vunpack.c.l.b16 %v69
  %v204 = vunpack.c.l.b16 %v70
  %v205 = vunpack.c.l.b16 %v71
  %v206 = vunpack.c.l.b16 %v72
  %v207 = vunpack.c.l.b16 %v73
  %v208 = vunpack.c.l.b16 %v74
  %v209 = vunpack.c.l.b16 %v75
  %v210 = vunpack.c.l.b16 %v76
  %v211 = vunpack.c.l.b16 %v77
  %v212 = vunpack.c.l.b16 %v78
  %v213 = vunpack.c.l.b16 %v79
  %v214 = vunpack.c.l.b16 %v80
  %v215 = vunpack.c.l.b16 %v81
  %v216 = vunpack.c.l.b16 %v82
  %v217 = vunpack.c.l.b16 %v83
  %v218 = vunpack.c.l.b16 %v84
  %v219 = vunpack.c.l.b16 %v85
  %v220 = vunpack.c.l.b16 %v86
  %v221 = vunpack.c.l.b16 %v87
  %v222 = vunpack.c.l.b16 %v88
  %v223 = vunpack.c.l.b16 %v89
  %v224 = vunpack.c.l.b16 %v90
  %v225 = vunpack.c.l.b16 %v91
  %v226 = vunpack.c.l.b16 %v92
  %v227 = vunpack.c.l.b16 %v93
  %v228 = vunpack.c.l.b16 %v94
  %v229 = vunpack.c.l.b16 %v95
  %v230 = vunpack.c.l.b16 %v96
  %v231 = vunpack.c.l.b16 %v97
  %v232 = vunpack.c.l.b16 %v98
  %v233 = vpack.c.b16 %v198, %v197
  %v234 = vpack.c.b16 %v200, %v199
  %v235 = vpack.c.b16 %v202, %v201
  %v236 = vpack.c.b16 %v204, %v203
  %v237 = vpack.c.b16 %v206, %v205
  %v238 = vpack.c.b16 %v208, %v207
  %v239 = vpack.c.b16 %v210, %v209
  %v240 = vpack.c.b16 %v212, %v211
  %v241 = vpack.c.b16 %v214, %v213
  %v242 = vpack.c.b16 %v216, %v215
  %v243 = vpack.c.b16 %v218, %v217
  %v244 = vpack.c.b16 %v220, %v219
  %v245 = vpack.c.b16 %v222, %v221
  %v246 = vpack.c.b16 %v224, %v223
  %v247 = vpack.c.b16 %v226, %v225
  %v248 = vpack.c.b16 %v228, %v227
  %v249 = vpack.c.b16 %v230, %v229
  %v250 = vpack.c.b16 %v232, %v231
  %vm269 = vcmask 261120
  %v271 = vsel %vm269, %v153, 0
  %v274 = vsel %vm269, %v156, 0
  %276 = vmatprep.subr.bf16.mxu0 0
  %277 = vmatpush1.bf16.msra.mxu0 %v233
  %278 = vmatprep.subr.bf16.mxu0 0
  %279 = vmatpush1.bf16.msra.mxu0 %v234
  %280 = vmatprep.subr.bf16.mxu0 0
  %281 = vmatpush1.bf16.msra.mxu0 %v235
  %282 = vmatprep.subr.bf16.mxu0 0
  %283 = vmatpush1.bf16.msra.mxu0 %v236
  %284 = vmatprep.subr.bf16.mxu0 0
  %285 = vmatpush1.bf16.msra.mxu0 %v237
  %286 = vmatprep.subr.bf16.mxu0 0
  %287 = vmatpush1.bf16.msra.mxu0 %v238
  %288 = vmatprep.subr.bf16.mxu0 0
  %289 = vmatpush1.bf16.msra.mxu0 %v239
  %290 = vmatprep.subr.bf16.mxu0 0
  %291 = vmatpush1.bf16.msra.mxu0 %v240
  %292 = vmatprep.subr.bf16.mxu0 0
  %293 = vmatpush1.bf16.msra.mxu0 %v241
  %294 = vmatprep.subr.bf16.mxu0 0
  %295 = vmatpush1.bf16.msra.mxu0 %v242
  %296 = vmatprep.subr.bf16.mxu0 0
  %297 = vmatpush1.bf16.msra.mxu0 %v243
  %298 = vmatprep.subr.bf16.mxu0 0
  %299 = vmatpush1.bf16.msra.mxu0 %v244
  %300 = vmatprep.subr.bf16.mxu0 0
  %301 = vmatpush1.bf16.msra.mxu0 %v245
  %302 = vmatprep.subr.bf16.mxu0 0
  %303 = vmatpush1.bf16.msra.mxu0 %v246
  %304 = vmatprep.subr.bf16.mxu0 0
  %305 = vmatpush1.bf16.msra.mxu0 %v247
  %306 = vmatprep.subr.bf16.mxu0 0
  %307 = vmatpush1.bf16.msra.mxu0 %v248
  %308 = vmatprep.mubr.bf16.mxu0 %v152
  %309 = vmatmul.mubr.bf16.gmra.mrb[0].mxu0 %v151
  %v310 = vpop.f32.mrb[0].mxu0
  %v311 = vadd.f32 %v114, %v310
  %v312 = vpop.f32.mrb[0].mxu0
  %v313 = vpop.f32.mrb[0].mxu0
  %v314 = vadd.f32 %v119, %v313
  %v315 = vpop.f32.mrb[0].mxu0
  %316 = vmatprep.mubr.bf16.mxu0 %v155
  %317 = vmatmul.mubr.bf16.gmra.mrb[0].mxu0 %v154
  %v318 = vpop.f32.mrb[0].mxu0
  %v319 = vadd.f32 %v124, %v318
  %v320 = vpop.f32.mrb[0].mxu0
  %v321 = vpop.f32.mrb[0].mxu0
  %v322 = vadd.f32 %v129, %v321
  %v323 = vpop.f32.mrb[0].mxu0
  %324 = vdwg.mxu0
  %325 = vmatprep.subr.bf16.mxu0 0
  %326 = vmatpush1.bf16.msra.mxu0 %v249
  %327 = vmatprep.subr.bf16.mxu0 0
  %328 = vmatpush1.bf16.msra.mxu0 %v250
  %329 = vmatprep.subr.bf16.mxu0 0
  %330 = vmatpush1.bf16.msra.mxu0 0
  %331 = vmatprep.subr.bf16.mxu0 0
  %332 = vmatpush1.bf16.msra.mxu0 0
  %333 = vmatprep.subr.bf16.mxu0 0
  %334 = vmatpush1.bf16.msra.mxu0 0
  %335 = vmatprep.subr.bf16.mxu0 0
  %336 = vmatpush1.bf16.msra.mxu0 0
  %337 = vmatprep.subr.bf16.mxu0 0
  %338 = vmatpush1.bf16.msra.mxu0 0
  %339 = vmatprep.subr.bf16.mxu0 0
  %340 = vmatpush1.bf16.msra.mxu0 0
  %341 = vmatprep.subr.bf16.mxu0 0
  %342 = vmatpush1.bf16.msra.mxu0 0
  %343 = vmatprep.subr.bf16.mxu0 0
  %344 = vmatpush1.bf16.msra.mxu0 0
  %345 = vmatprep.subr.bf16.mxu0 0
  %346 = vmatpush1.bf16.msra.mxu0 0
  %347 = vmatprep.subr.bf16.mxu0 0
  %348 = vmatpush1.bf16.msra.mxu0 0
  %349 = vmatprep.subr.bf16.mxu0 0
  %350 = vmatpush1.bf16.msra.mxu0 0
  %351 = vmatprep.subr.bf16.mxu0 0
  %352 = vmatpush1.bf16.msra.mxu0 0
  %353 = vmatprep.subr.bf16.mxu0 0
  %354 = vmatpush1.bf16.msra.mxu0 0
  %355 = vmatprep.subr.bf16.mxu0 0
  %356 = vmatpush1.bf16.msra.mxu0 0
  %357 = vmatprep.mubr.bf16.mxu0 0
  %358 = vmatmul.mubr.bf16.gmra.mrb[0].mxu0 %v271
  %v359 = vpop.f32.mrb[0].mxu0
  %v360 = vadd.f32 %v311, %v359
  %v361 = vpop.f32.mrb[0].mxu0
  %v362 = vpop.f32.mrb[0].mxu0
  %v363 = vadd.f32 %v314, %v362
  %v364 = vpop.f32.mrb[0].mxu0
  %365 = vmatprep.mubr.bf16.mxu0 0
  %366 = vmatmul.mubr.bf16.gmra.mrb[0].mxu0 %v274
  %v367 = vpop.f32.mrb[0].mxu0
  %v368 = vadd.f32 %v319, %v367
  %v369 = vpop.f32.mrb[0].mxu0
  %v370 = vpop.f32.mrb[0].mxu0
  %v371 = vadd.f32 %v322, %v370
  %v372 = vpop.f32.mrb[0].mxu0
  %373 = vdwg.mxu0
  %v374 = vld [vmem:[%s1] sm:$0xf]
  %v375 = vld [vmem:[%s1 + $0x4] sm:$0xf]
  %v376 = vld [vmem:[%s1 + $0x8] sm:$0xf]
  %v377 = vld [vmem:[%s1 + $0xc] sm:$0xf]
  %v378 = vunpack.c.l.bf16 %v374
  %v379 = vunpack.c.l.bf16 %v375
  %v380 = vunpack.c.l.bf16 %v376
  %v381 = vunpack.c.l.bf16 %v377
  %v382 = vmax.f32 %v378, 0.0
  %v383 = vmax.f32 %v379, 0.0
  %v384 = vmax.f32 %v380, 0.0
  %v385 = vmax.f32 %v381, 0.0
  %v386 = vpack.c.bf16 %v383, %v382
  %v387 = vpack.c.bf16 %v385, %v384
  %v388 = vmax.f32 %v360, 0.0
  %v389 = vmax.f32 %v363, 0.0
  %v390 = vmax.f32 %v368, 0.0
  %v391 = vmax.f32 %v371, 0.0
  %v392 = vpack.c.bf16 %v389, %v388
  %v393 = vpack.c.bf16 %v391, %v390
  %v394 = vld [vmem:[%s4] sm:$0xf]
  %v395 = vld [vmem:[%s4 + $0x4] sm:$0xf]
  %v396 = vld [vmem:[%s4 + $0x8] sm:$0xf]
  %v397 = vld [vmem:[%s4 + $0xc] sm:$0xf]
  %v398 = vld [vmem:[%s5] sm:$0xff]
  %v399 = vld [vmem:[%s5 + $0x8] sm:$0xff]
  %v400 = vld [vmem:[%s5 + $0x10] sm:$0xff]
  %v401 = vld [vmem:[%s5 + $0x18] sm:$0xff]
  %403 = vset.pattern.permute.xlu0 0
  %404 = vperm.xlu0 %403, %v398
  %v405 = vpop.permute.xlu0 %404
  %408 = vset.pattern.permute.xlu0 0
  %409 = vperm.xlu0 %408, %v399
  %v410 = vpop.permute.xlu0 %409
  %413 = vset.pattern.permute.xlu0 0
  %414 = vperm.xlu0 %413, %v400
  %v415 = vpop.permute.xlu0 %414
  %418 = vset.pattern.permute.xlu0 0
  %419 = vperm.xlu0 %418, %v401
  %v420 = vpop.permute.xlu0 %419
  %v426 = vunpack.c.l.b16 %v394
  %v427 = vunpack.c.l.b16 %v395
  %v428 = vunpack.c.l.b16 %v396
  %v429 = vunpack.c.l.b16 %v397
  %v430 = vpack.c.b16 %v427, %v426
  %v431 = vpack.c.b16 %v429, %v428
  %vm432 = vcmask 523264
  %v434 = vsel %vm432, %v430, 0
  %v437 = vsel %vm432, %v431, 0
  %439 = vmatprep.subr.bf16.mxu0 0
  %440 = vmatpush1.bf16.msra.mxu0 %v386
  %441 = vmatprep.subr.bf16.mxu0 0
  %442 = vmatpush1.bf16.msra.mxu0 %v387
  %443 = vmatprep.subr.bf16.mxu0 0
  %444 = vmatpush1.bf16.msra.mxu0 %v392
  %445 = vmatprep.subr.bf16.mxu0 0
  %446 = vmatpush1.bf16.msra.mxu0 %v393
  %447 = vmatprep.subr.bf16.mxu0 0
  %448 = vmatpush1.bf16.msra.mxu0 0
  %449 = vmatprep.subr.bf16.mxu0 0
  %450 = vmatpush1.bf16.msra.mxu0 0
  %451 = vmatprep.subr.bf16.mxu0 0
  %452 = vmatpush1.bf16.msra.mxu0 0
  %453 = vmatprep.subr.bf16.mxu0 0
  %454 = vmatpush1.bf16.msra.mxu0 0
  %455 = vmatprep.subr.bf16.mxu0 0
  %456 = vmatpush1.bf16.msra.mxu0 0
  %457 = vmatprep.subr.bf16.mxu0 0
  %458 = vmatpush1.bf16.msra.mxu0 0
  %459 = vmatprep.subr.bf16.mxu0 0
  %460 = vmatpush1.bf16.msra.mxu0 0
  %461 = vmatprep.subr.bf16.mxu0 0
  %462 = vmatpush1.bf16.msra.mxu0 0
  %463 = vmatprep.subr.bf16.mxu0 0
  %464 = vmatpush1.bf16.msra.mxu0 0
  %465 = vmatprep.subr.bf16.mxu0 0
  %466 = vmatpush1.bf16.msra.mxu0 0
  %467 = vmatprep.subr.bf16.mxu0 0
  %468 = vmatpush1.bf16.msra.mxu0 0
  %469 = vmatprep.subr.bf16.mxu0 0
  %470 = vmatpush1.bf16.msra.mxu0 0
  %471 = vmatprep.mubr.bf16.mxu0 0
  %472 = vmatmul.mubr.bf16.gmra.mrb[0].mxu0 %v434
  %v473 = vpop.f32.mrb[0].mxu0
  %v474 = vadd.f32 %v405, %v473
  %v475 = vpop.f32.mrb[0].mxu0
  %v476 = vpop.f32.mrb[0].mxu0
  %v477 = vadd.f32 %v410, %v476
  %v478 = vpop.f32.mrb[0].mxu0
  %479 = vmatprep.mubr.bf16.mxu0 0
  %480 = vmatmul.mubr.bf16.gmra.mrb[0].mxu0 %v437
  %v481 = vpop.f32.mrb[0].mxu0
  %v482 = vadd.f32 %v415, %v481
  %v483 = vpop.f32.mrb[0].mxu0
  %v484 = vpop.f32.mrb[0].mxu0
  %v485 = vadd.f32 %v420, %v484
  %v486 = vpop.f32.mrb[0].mxu0
  %487 = vdwg.mxu0
  %v488 = vmax.f32 %v474, 0.0
  %v489 = vmax.f32 %v477, 0.0
  %v490 = vmax.f32 %v482, 0.0
  %v491 = vmax.f32 %v485, 0.0
  %v492 = vmax.f32 %v488, 0.0
  %v493 = vmax.f32 %v489, 0.0
  %v494 = vmax.f32 %v490, 0.0
  %v495 = vmax.f32 %v491, 0.0
  %v496 = vpack.c.bf16 %v493, %v492
  %v497 = vpack.c.bf16 %v495, %v494
  %s498 = scalar_lea.vmem %s4, 16
  %v499 = vld [vmem:[%s498] sm:$0xf]
  %v500 = vld [vmem:[%s498 + $0x4] sm:$0xf]
  %v501 = vld [vmem:[%s498 + $0x8] sm:$0xf]
  %v502 = vld [vmem:[%s498 + $0xc] sm:$0xf]
  %s503 = scalar_lea.vmem %s5, 32
  %v504 = vld [vmem:[%s503] sm:$0xff]
  %v505 = vld [vmem:[%s503 + $0x8] sm:$0xff]
  %v506 = vld [vmem:[%s503 + $0x10] sm:$0xff]
  %v507 = vld [vmem:[%s503 + $0x18] sm:$0xff]
  %509 = vset.pattern.permute.xlu0 0
  %510 = vperm.xlu0 %509, %v504
  %v511 = vpop.permute.xlu0 %510
  %514 = vset.pattern.permute.xlu0 0
  %515 = vperm.xlu0 %514, %v505
  %v516 = vpop.permute.xlu0 %515
  %519 = vset.pattern.permute.xlu0 0
  %520 = vperm.xlu0 %519, %v506
  %v521 = vpop.permute.xlu0 %520
  %524 = vset.pattern.permute.xlu0 0
  %525 = vperm.xlu0 %524, %v507
  %v526 = vpop.permute.xlu0 %525
  %v532 = vunpack.c.l.b16 %v499
  %v533 = vunpack.c.l.b16 %v500
  %v534 = vunpack.c.l.b16 %v501
  %v535 = vunpack.c.l.b16 %v502
  %v536 = vpack.c.b16 %v533, %v532
  %v537 = vpack.c.b16 %v535, %v534
  %v539 = vsel %vm432, %v536, 0
  %v542 = vsel %vm432, %v537, 0
  %544 = vmatprep.subr.bf16.mxu0 0
  %545 = vmatpush1.bf16.msra.mxu0 %v392
  %546 = vmatprep.subr.bf16.mxu0 0
  %547 = vmatpush1.bf16.msra.mxu0 %v393
  %548 = vmatprep.subr.bf16.mxu0 0
  %549 = vmatpush1.bf16.msra.mxu0 %v496
  %550 = vmatprep.subr.bf16.mxu0 0
  %551 = vmatpush1.bf16.msra.mxu0 %v497
  %552 = vmatprep.subr.bf16.mxu0 0
  %553 = vmatpush1.bf16.msra.mxu0 0
  %554 = vmatprep.subr.bf16.mxu0 0
  %555 = vmatpush1.bf16.msra.mxu0 0
  %556 = vmatprep.subr.bf16.mxu0 0
  %557 = vmatpush1.bf16.msra.mxu0 0
  %558 = vmatprep.subr.bf16.mxu0 0
  %559 = vmatpush1.bf16.msra.mxu0 0
  %560 = vmatprep.subr.bf16.mxu0 0
  %561 = vmatpush1.bf16.msra.mxu0 0
  %562 = vmatprep.subr.bf16.mxu0 0
  %563 = vmatpush1.bf16.msra.mxu0 0
  %564 = vmatprep.subr.bf16.mxu0 0
  %565 = vmatpush1.bf16.msra.mxu0 0
  %566 = vmatprep.subr.bf16.mxu0 0
  %567 = vmatpush1.bf16.msra.mxu0 0
  %568 = vmatprep.subr.bf16.mxu0 0
  %569 = vmatpush1.bf16.msra.mxu0 0
  %570 = vmatprep.subr.bf16.mxu0 0
  %571 = vmatpush1.bf16.msra.mxu0 0
  %572 = vmatprep.subr.bf16.mxu0 0
  %573 = vmatpush1.bf16.msra.mxu0 0
  %574 = vmatprep.subr.bf16.mxu0 0
  %575 = vmatpush1.bf16.msra.mxu0 0
  %576 = vmatprep.mubr.bf16.mxu0 0
  %577 = vmatmul.mubr.bf16.gmra.mrb[0].mxu0 %v539
  %v578 = vpop.f32.mrb[0].mxu0
  %v579 = vadd.f32 %v511, %v578
  %v580 = vpop.f32.mrb[0].mxu0
  %v581 = vpop.f32.mrb[0].mxu0
  %v582 = vadd.f32 %v516, %v581
  %v583 = vpop.f32.mrb[0].mxu0
  %584 = vmatprep.mubr.bf16.mxu0 0
  %585 = vmatmul.mubr.bf16.gmra.mrb[0].mxu0 %v542
  %v586 = vpop.f32.mrb[0].mxu0
  %v587 = vadd.f32 %v521, %v586
  %v588 = vpop.f32.mrb[0].mxu0
  %v589 = vpop.f32.mrb[0].mxu0
  %v590 = vadd.f32 %v526, %v589
  %v591 = vpop.f32.mrb[0].mxu0
  %592 = vdwg.mxu0
  %v593 = vmax.f32 %v579, 0.0
  %v594 = vmax.f32 %v582, 0.0
  %v595 = vmax.f32 %v587, 0.0
  %v596 = vmax.f32 %v590, 0.0
  %v597 = vmax.f32 %v593, 0.0
  %v598 = vmax.f32 %v594, 0.0
  %v599 = vmax.f32 %v595, 0.0
  %v600 = vmax.f32 %v596, 0.0
  %v601 = vpack.c.bf16 %v598, %v597
  %v602 = vpack.c.bf16 %v600, %v599
  %s603 = scalar_lea.vmem %s4, 32
  %v604 = vld [vmem:[%s603] sm:$0xf]
  %v605 = vld [vmem:[%s603 + $0x4] sm:$0xf]
  %v606 = vld [vmem:[%s603 + $0x8] sm:$0xf]
  %v607 = vld [vmem:[%s603 + $0xc] sm:$0xf]
  %s608 = scalar_lea.vmem %s5, 64
  %v609 = vld [vmem:[%s608] sm:$0xff]
  %v610 = vld [vmem:[%s608 + $0x8] sm:$0xff]
  %v611 = vld [vmem:[%s608 + $0x10] sm:$0xff]
  %v612 = vld [vmem:[%s608 + $0x18] sm:$0xff]
  %614 = vset.pattern.permute.xlu0 0
  %615 = vperm.xlu0 %614, %v609
  %v616 = vpop.permute.xlu0 %615
  %619 = vset.pattern.permute.xlu0 0
  %620 = vperm.xlu0 %619, %v610
  %v621 = vpop.permute.xlu0 %620
  %624 = vset.pattern.permute.xlu0 0
  %625 = vperm.xlu0 %624, %v611
  %v626 = vpop.permute.xlu0 %625
  %629 = vset.pattern.permute.xlu0 0
  %630 = vperm.xlu0 %629, %v612
  %v631 = vpop.permute.xlu0 %630
  %v637 = vunpack.c.l.b16 %v604
  %v638 = vunpack.c.l.b16 %v605
  %v639 = vunpack.c.l.b16 %v606
  %v640 = vunpack.c.l.b16 %v607
  %v641 = vpack.c.b16 %v638, %v637
  %v642 = vpack.c.b16 %v640, %v639
  %v644 = vsel %vm432, %v641, 0
  %v647 = vsel %vm432, %v642, 0
  %649 = vmatprep.subr.bf16.mxu0 0
  %650 = vmatpush1.bf16.msra.mxu0 %v496
  %651 = vmatprep.subr.bf16.mxu0 0
  %652 = vmatpush1.bf16.msra.mxu0 %v497
  %653 = vmatprep.subr.bf16.mxu0 0
  %654 = vmatpush1.bf16.msra.mxu0 %v601
  %655 = vmatprep.subr.bf16.mxu0 0
  %656 = vmatpush1.bf16.msra.mxu0 %v602
  %657 = vmatprep.subr.bf16.mxu0 0
  %658 = vmatpush1.bf16.msra.mxu0 0
  %659 = vmatprep.subr.bf16.mxu0 0
  %660 = vmatpush1.bf16.msra.mxu0 0
  %661 = vmatprep.subr.bf16.mxu0 0
  %662 = vmatpush1.bf16.msra.mxu0 0
  %663 = vmatprep.subr.bf16.mxu0 0
  %664 = vmatpush1.bf16.msra.mxu0 0
  %665 = vmatprep.subr.bf16.mxu0 0
  %666 = vmatpush1.bf16.msra.mxu0 0
  %667 = vmatprep.subr.bf16.mxu0 0
  %668 = vmatpush1.bf16.msra.mxu0 0
  %669 = vmatprep.subr.bf16.mxu0 0
  %670 = vmatpush1.bf16.msra.mxu0 0
  %671 = vmatprep.subr.bf16.mxu0 0
  %672 = vmatpush1.bf16.msra.mxu0 0
  %673 = vmatprep.subr.bf16.mxu0 0
  %674 = vmatpush1.bf16.msra.mxu0 0
  %675 = vmatprep.subr.bf16.mxu0 0
  %676 = vmatpush1.bf16.msra.mxu0 0
  %677 = vmatprep.subr.bf16.mxu0 0
  %678 = vmatpush1.bf16.msra.mxu0 0
  %679 = vmatprep.subr.bf16.mxu0 0
  %680 = vmatpush1.bf16.msra.mxu0 0
  %681 = vmatprep.mubr.bf16.mxu0 0
  %682 = vmatmul.mubr.bf16.gmra.mrb[0].mxu0 %v644
  %v683 = vpop.f32.mrb[0].mxu0
  %v684 = vadd.f32 %v616, %v683
  %v685 = vpop.f32.mrb[0].mxu0
  %v686 = vpop.f32.mrb[0].mxu0
  %v687 = vadd.f32 %v621, %v686
  %v688 = vpop.f32.mrb[0].mxu0
  %689 = vmatprep.mubr.bf16.mxu0 0
  %690 = vmatmul.mubr.bf16.gmra.mrb[0].mxu0 %v647
  %v691 = vpop.f32.mrb[0].mxu0
  %v692 = vadd.f32 %v626, %v691
  %v693 = vpop.f32.mrb[0].mxu0
  %v694 = vpop.f32.mrb[0].mxu0
  %v695 = vadd.f32 %v631, %v694
  %v696 = vpop.f32.mrb[0].mxu0
  %697 = vdwg.mxu0
  %v698 = vmax.f32 %v684, 0.0
  %v699 = vmax.f32 %v687, 0.0
  %v700 = vmax.f32 %v692, 0.0
  %v701 = vmax.f32 %v695, 0.0
  %702 = vst [vmem:[%s6] sm:$0xff] %v593
  %703 = vst [vmem:[%s6 + $0x8] sm:$0xff] %v594
  %704 = vst [vmem:[%s6 + $0x10] sm:$0xff] %v595
  %705 = vst [vmem:[%s6 + $0x18] sm:$0xff] %v596
  %v706 = vmax.f32 %v698, 0.0
  %v707 = vmax.f32 %v699, 0.0
  %v708 = vmax.f32 %v700, 0.0
  %v709 = vmax.f32 %v701, 0.0
  %v710 = vpack.c.bf16 %v707, %v706
  %v711 = vpack.c.bf16 %v709, %v708
  %s712 = scalar_lea.vmem %s4, 48
  %v713 = vld [vmem:[%s712] sm:$0xf]
  %v714 = vld [vmem:[%s712 + $0x4] sm:$0xf]
  %v715 = vld [vmem:[%s712 + $0x8] sm:$0xf]
  %v716 = vld [vmem:[%s712 + $0xc] sm:$0xf]
  %s717 = scalar_lea.vmem %s5, 96
  %v718 = vld [vmem:[%s717] sm:$0xff]
  %v719 = vld [vmem:[%s717 + $0x8] sm:$0xff]
  %v720 = vld [vmem:[%s717 + $0x10] sm:$0xff]
  %v721 = vld [vmem:[%s717 + $0x18] sm:$0xff]
  %723 = vset.pattern.permute.xlu0 0
  %724 = vperm.xlu0 %723, %v718
  %v725 = vpop.permute.xlu0 %724
  %728 = vset.pattern.permute.xlu0 0
  %729 = vperm.xlu0 %728, %v719
  %v730 = vpop.permute.xlu0 %729
  %733 = vset.pattern.permute.xlu0 0
  %734 = vperm.xlu0 %733, %v720
  %v735 = vpop.permute.xlu0 %734
  %738 = vset.pattern.permute.xlu0 0
  %739 = vperm.xlu0 %738, %v721
  %v740 = vpop.permute.xlu0 %739
  %v746 = vunpack.c.l.b16 %v713
  %v747 = vunpack.c.l.b16 %v714
  %v748 = vunpack.c.l.b16 %v715
  %v749 = vunpack.c.l.b16 %v716
  %v750 = vpack.c.b16 %v747, %v746
  %v751 = vpack.c.b16 %v749, %v748
  %v753 = vsel %vm432, %v750, 0
  %v756 = vsel %vm432, %v751, 0
  %758 = vmatprep.subr.bf16.mxu0 0
  %759 = vmatpush1.bf16.msra.mxu0 %v601
  %760 = vmatprep.subr.bf16.mxu0 0
  %761 = vmatpush1.bf16.msra.mxu0 %v602
  %762 = vmatprep.subr.bf16.mxu0 0
  %763 = vmatpush1.bf16.msra.mxu0 %v710
  %764 = vmatprep.subr.bf16.mxu0 0
  %765 = vmatpush1.bf16.msra.mxu0 %v711
  %766 = vmatprep.subr.bf16.mxu0 0
  %767 = vmatpush1.bf16.msra.mxu0 0
  %768 = vmatprep.subr.bf16.mxu0 0
  %769 = vmatpush1.bf16.msra.mxu0 0
  %770 = vmatprep.subr.bf16.mxu0 0
  %771 = vmatpush1.bf16.msra.mxu0 0
  %772 = vmatprep.subr.bf16.mxu0 0
  %773 = vmatpush1.bf16.msra.mxu0 0
  %774 = vmatprep.subr.bf16.mxu0 0
  %775 = vmatpush1.bf16.msra.mxu0 0
  %776 = vmatprep.subr.bf16.mxu0 0
  %777 = vmatpush1.bf16.msra.mxu0 0
  %778 = vmatprep.subr.bf16.mxu0 0
  %779 = vmatpush1.bf16.msra.mxu0 0
  %780 = vmatprep.subr.bf16.mxu0 0
  %781 = vmatpush1.bf16.msra.mxu0 0
  %782 = vmatprep.subr.bf16.mxu0 0
  %783 = vmatpush1.bf16.msra.mxu0 0
  %784 = vmatprep.subr.bf16.mxu0 0
  %785 = vmatpush1.bf16.msra.mxu0 0
  %786 = vmatprep.subr.bf16.mxu0 0
  %787 = vmatpush1.bf16.msra.mxu0 0
  %788 = vmatprep.subr.bf16.mxu0 0
  %789 = vmatpush1.bf16.msra.mxu0 0
  %790 = vmatprep.mubr.bf16.mxu0 0
  %791 = vmatmul.mubr.bf16.gmra.mrb[0].mxu0 %v753
  %v792 = vpop.f32.mrb[0].mxu0
  %v793 = vadd.f32 %v725, %v792
  %v794 = vpop.f32.mrb[0].mxu0
  %v795 = vpop.f32.mrb[0].mxu0
  %v796 = vadd.f32 %v730, %v795
  %v797 = vpop.f32.mrb[0].mxu0
  %798 = vmatprep.mubr.bf16.mxu0 0
  %799 = vmatmul.mubr.bf16.gmra.mrb[0].mxu0 %v756
  %v800 = vpop.f32.mrb[0].mxu0
  %v801 = vadd.f32 %v735, %v800
  %v802 = vpop.f32.mrb[0].mxu0
  %v803 = vpop.f32.mrb[0].mxu0
  %v804 = vadd.f32 %v740, %v803
  %v805 = vpop.f32.mrb[0].mxu0
  %806 = vdwg.mxu0
  %v807 = vmax.f32 %v793, 0.0
  %v808 = vmax.f32 %v796, 0.0
  %v809 = vmax.f32 %v801, 0.0
  %v810 = vmax.f32 %v804, 0.0
  %v811 = vmax.f32 %v807, 0.0
  %v812 = vmax.f32 %v808, 0.0
  %v813 = vmax.f32 %v809, 0.0
  %v814 = vmax.f32 %v810, 0.0
  %v815 = vpack.c.bf16 %v812, %v811
  %v816 = vpack.c.bf16 %v814, %v813
  %s817 = scalar_lea.vmem %s4, 64
  %v818 = vld [vmem:[%s817] sm:$0xf]
  %v819 = vld [vmem:[%s817 + $0x4] sm:$0xf]
  %v820 = vld [vmem:[%s817 + $0x8] sm:$0xf]
  %v821 = vld [vmem:[%s817 + $0xc] sm:$0xf]
  %s822 = scalar_lea.vmem %s5, 128
  %v823 = vld [vmem:[%s822] sm:$0xff]
  %v824 = vld [vmem:[%s822 + $0x8] sm:$0xff]
  %v825 = vld [vmem:[%s822 + $0x10] sm:$0xff]
  %v826 = vld [vmem:[%s822 + $0x18] sm:$0xff]
  %828 = vset.pattern.permute.xlu0 0
  %829 = vperm.xlu0 %828, %v823
  %v830 = vpop.permute.xlu0 %829
  %833 = vset.pattern.permute.xlu0 0
  %834 = vperm.xlu0 %833, %v824
  %v835 = vpop.permute.xlu0 %834
  %838 = vset.pattern.permute.xlu0 0
  %839 = vperm.xlu0 %838, %v825
  %v840 = vpop.permute.xlu0 %839
  %843 = vset.pattern.permute.xlu0 0
  %844 = vperm.xlu0 %843, %v826
  %v845 = vpop.permute.xlu0 %844
  %v851 = vunpack.c.l.b16 %v818
  %v852 = vunpack.c.l.b16 %v819
  %v853 = vunpack.c.l.b16 %v820
  %v854 = vunpack.c.l.b16 %v821
  %v855 = vpack.c.b16 %v852, %v851
  %v856 = vpack.c.b16 %v854, %v853
  %v858 = vsel %vm432, %v855, 0
  %v861 = vsel %vm432, %v856, 0
  %863 = vmatprep.subr.bf16.mxu0 0
  %864 = vmatpush1.bf16.msra.mxu0 %v710
  %865 = vmatprep.subr.bf16.mxu0 0
  %866 = vmatpush1.bf16.msra.mxu0 %v711
  %867 = vmatprep.subr.bf16.mxu0 0
  %868 = vmatpush1.bf16.msra.mxu0 %v815
  %869 = vmatprep.subr.bf16.mxu0 0
  %870 = vmatpush1.bf16.msra.mxu0 %v816
  %871 = vmatprep.subr.bf16.mxu0 0
  %872 = vmatpush1.bf16.msra.mxu0 0
  %873 = vmatprep.subr.bf16.mxu0 0
  %874 = vmatpush1.bf16.msra.mxu0 0
  %875 = vmatprep.subr.bf16.mxu0 0
  %876 = vmatpush1.bf16.msra.mxu0 0
  %877 = vmatprep.subr.bf16.mxu0 0
  %878 = vmatpush1.bf16.msra.mxu0 0
  %879 = vmatprep.subr.bf16.mxu0 0
  %880 = vmatpush1.bf16.msra.mxu0 0
  %881 = vmatprep.subr.bf16.mxu0 0
  %882 = vmatpush1.bf16.msra.mxu0 0
  %883 = vmatprep.subr.bf16.mxu0 0
  %884 = vmatpush1.bf16.msra.mxu0 0
  %885 = vmatprep.subr.bf16.mxu0 0
  %886 = vmatpush1.bf16.msra.mxu0 0
  %887 = vmatprep.subr.bf16.mxu0 0
  %888 = vmatpush1.bf16.msra.mxu0 0
  %889 = vmatprep.subr.bf16.mxu0 0
  %890 = vmatpush1.bf16.msra.mxu0 0
  %891 = vmatprep.subr.bf16.mxu0 0
  %892 = vmatpush1.bf16.msra.mxu0 0
  %893 = vmatprep.subr.bf16.mxu0 0
  %894 = vmatpush1.bf16.msra.mxu0 0
  %895 = vmatprep.mubr.bf16.mxu0 0
  %896 = vmatmul.mubr.bf16.gmra.mrb[0].mxu0 %v858
  %v897 = vpop.f32.mrb[0].mxu0
  %v898 = vadd.f32 %v830, %v897
  %v899 = vpop.f32.mrb[0].mxu0
  %v900 = vpop.f32.mrb[0].mxu0
  %v901 = vadd.f32 %v835, %v900
  %v902 = vpop.f32.mrb[0].mxu0
  %903 = vmatprep.mubr.bf16.mxu0 0
  %904 = vmatmul.mubr.bf16.gmra.mrb[0].mxu0 %v861
  %v905 = vpop.f32.mrb[0].mxu0
  %v906 = vadd.f32 %v840, %v905
  %v907 = vpop.f32.mrb[0].mxu0
  %v908 = vpop.f32.mrb[0].mxu0
  %v909 = vadd.f32 %v845, %v908
  %v910 = vpop.f32.mrb[0].mxu0
  %911 = vdwg.mxu0
  %v912 = vmax.f32 %v898, 0.0
  %v913 = vmax.f32 %v901, 0.0
  %v914 = vmax.f32 %v906, 0.0
  %v915 = vmax.f32 %v909, 0.0
  %916 = vst [vmem:[%s7] sm:$0xff] %v807
  %917 = vst [vmem:[%s7 + $0x8] sm:$0xff] %v808
  %918 = vst [vmem:[%s7 + $0x10] sm:$0xff] %v809
  %919 = vst [vmem:[%s7 + $0x18] sm:$0xff] %v810
  %v920 = vmax.f32 %v912, 0.0
  %v921 = vmax.f32 %v913, 0.0
  %v922 = vmax.f32 %v914, 0.0
  %v923 = vmax.f32 %v915, 0.0
  %v924 = vpack.c.bf16 %v921, %v920
  %v925 = vpack.c.bf16 %v923, %v922
  %s926 = scalar_lea.vmem %s4, 80
  %v927 = vld [vmem:[%s926] sm:$0xf]
  %v928 = vld [vmem:[%s926 + $0x4] sm:$0xf]
  %v929 = vld [vmem:[%s926 + $0x8] sm:$0xf]
  %v930 = vld [vmem:[%s926 + $0xc] sm:$0xf]
  %s931 = scalar_lea.vmem %s5, 160
  %v932 = vld [vmem:[%s931] sm:$0xff]
  %v933 = vld [vmem:[%s931 + $0x8] sm:$0xff]
  %v934 = vld [vmem:[%s931 + $0x10] sm:$0xff]
  %v935 = vld [vmem:[%s931 + $0x18] sm:$0xff]
  %937 = vset.pattern.permute.xlu0 0
  %938 = vperm.xlu0 %937, %v932
  %v939 = vpop.permute.xlu0 %938
  %942 = vset.pattern.permute.xlu0 0
  %943 = vperm.xlu0 %942, %v933
  %v944 = vpop.permute.xlu0 %943
  %947 = vset.pattern.permute.xlu0 0
  %948 = vperm.xlu0 %947, %v934
  %v949 = vpop.permute.xlu0 %948
  %952 = vset.pattern.permute.xlu0 0
  %953 = vperm.xlu0 %952, %v935
  %v954 = vpop.permute.xlu0 %953
  %v960 = vunpack.c.l.b16 %v927
  %v961 = vunpack.c.l.b16 %v928
  %v962 = vunpack.c.l.b16 %v929
  %v963 = vunpack.c.l.b16 %v930
  %v964 = vpack.c.b16 %v961, %v960
  %v965 = vpack.c.b16 %v963, %v962
  %v967 = vsel %vm432, %v964, 0
  %v970 = vsel %vm432, %v965, 0
  %972 = vmatprep.subr.bf16.mxu0 0
  %973 = vmatpush1.bf16.msra.mxu0 %v815
  %974 = vmatprep.subr.bf16.mxu0 0
  %975 = vmatpush1.bf16.msra.mxu0 %v816
  %976 = vmatprep.subr.bf16.mxu0 0
  %977 = vmatpush1.bf16.msra.mxu0 %v924
  %978 = vmatprep.subr.bf16.mxu0 0
  %979 = vmatpush1.bf16.msra.mxu0 %v925
  %980 = vmatprep.subr.bf16.mxu0 0
  %981 = vmatpush1.bf16.msra.mxu0 0
  %982 = vmatprep.subr.bf16.mxu0 0
  %983 = vmatpush1.bf16.msra.mxu0 0
  %984 = vmatprep.subr.bf16.mxu0 0
  %985 = vmatpush1.bf16.msra.mxu0 0
  %986 = vmatprep.subr.bf16.mxu0 0
  %987 = vmatpush1.bf16.msra.mxu0 0
  %988 = vmatprep.subr.bf16.mxu0 0
  %989 = vmatpush1.bf16.msra.mxu0 0
  %990 = vmatprep.subr.bf16.mxu0 0
  %991 = vmatpush1.bf16.msra.mxu0 0
  %992 = vmatprep.subr.bf16.mxu0 0
  %993 = vmatpush1.bf16.msra.mxu0 0
  %994 = vmatprep.subr.bf16.mxu0 0
  %995 = vmatpush1.bf16.msra.mxu0 0
  %996 = vmatprep.subr.bf16.mxu0 0
  %997 = vmatpush1.bf16.msra.mxu0 0
  %998 = vmatprep.subr.bf16.mxu0 0
  %999 = vmatpush1.bf16.msra.mxu0 0
  %1000 = vmatprep.subr.bf16.mxu0 0
  %1001 = vmatpush1.bf16.msra.mxu0 0
  %1002 = vmatprep.subr.bf16.mxu0 0
  %1003 = vmatpush1.bf16.msra.mxu0 0
  %1004 = vmatprep.mubr.bf16.mxu0 0
  %1005 = vmatmul.mubr.bf16.gmra.mrb[0].mxu0 %v967
  %v1006 = vpop.f32.mrb[0].mxu0
  %v1007 = vadd.f32 %v939, %v1006
  %v1008 = vpop.f32.mrb[0].mxu0
  %v1009 = vpop.f32.mrb[0].mxu0
  %v1010 = vadd.f32 %v944, %v1009
  %v1011 = vpop.f32.mrb[0].mxu0
  %1012 = vmatprep.mubr.bf16.mxu0 0
  %1013 = vmatmul.mubr.bf16.gmra.mrb[0].mxu0 %v970
  %v1014 = vpop.f32.mrb[0].mxu0
  %v1015 = vadd.f32 %v949, %v1014
  %v1016 = vpop.f32.mrb[0].mxu0
  %v1017 = vpop.f32.mrb[0].mxu0
  %v1018 = vadd.f32 %v954, %v1017
  %v1019 = vpop.f32.mrb[0].mxu0
  %1020 = vdwg.mxu0
  %v1021 = vmax.f32 %v1007, 0.0
  %v1022 = vmax.f32 %v1010, 0.0
  %v1023 = vmax.f32 %v1015, 0.0
  %v1024 = vmax.f32 %v1018, 0.0
  %1025 = vst [vmem:[%s8] sm:$0xff] %v1021
  %1026 = vst [vmem:[%s8 + $0x8] sm:$0xff] %v1022
  %1027 = vst [vmem:[%s8 + $0x10] sm:$0xff] %v1023
  %1028 = vst [vmem:[%s8 + $0x18] sm:$0xff] %v1024
  // Predicated region
  $region26: #{feature_extractor_forward.5} parent=0 // pred_check
    _
  $region27: #{feature_extractor_forward.5} parent=0 // pred_check_branch
    %1030 = sbr.rel (0) target = $region29
  $region28: #{feature_extractor_forward.5} parent=0 // pred_region
    _
  $region29: #{feature_extractor_forward.5} parent=0 // pred_fallthru
    _
  // Predicated region
  $region30: #{feature_extractor_forward.5} parent=0 // pred_check
    _
  $region31: #{feature_extractor_forward.5} parent=0 // pred_check_branch
    %1032 = sbr.rel (0) target = $region33
  $region32: #{feature_extractor_forward.5} parent=0 // pred_region
    _
  $region33: #{feature_extractor_forward.5} parent=0 // pred_fallthru
    _
  // Predicated region
  $region34: #{feature_extractor_forward.5} parent=0 // pred_check
    _
  $region35: #{feature_extractor_forward.5} parent=0 // pred_check_branch
    %1034 = sbr.rel (0) target = $region37
  $region36: #{feature_extractor_forward.5} parent=0 // pred_region
    _
  $region37: #{feature_extractor_forward.5} parent=0 // pred_fallthru
    _
  // Predicated region
  $region38: #{feature_extractor_forward.5} parent=0 // pred_check
    _
  $region39: #{feature_extractor_forward.5} parent=0 // pred_check_branch
    %1036 = sbr.rel (0) target = $region41
  $region40: #{feature_extractor_forward.5} parent=0 // pred_region
    _
  $region41: #{feature_extractor_forward.5} parent=0 // pred_fallthru
    _
  // Predicated region
  $region42: #{feature_extractor_forward.5} parent=0 // pred_check
    _
  $region43: #{feature_extractor_forward.5} parent=0 // pred_check_branch
    %1038 = sbr.rel (0) target = $region45
  $region44: #{feature_extractor_forward.5} parent=0 // pred_region
    _
  $region45: #{feature_extractor_forward.5} parent=0 // pred_fallthru
    _
  // Predicated region
  $region46: #{feature_extractor_forward.5} parent=0 // pred_check
    _
  $region47: #{feature_extractor_forward.5} parent=0 // pred_check_branch
    %1040 = sbr.rel (0) target = $region49
  $region48: #{feature_extractor_forward.5} parent=0 // pred_region
    _
  $region49: #{feature_extractor_forward.5} parent=0 // pred_fallthru
    _

</llo_original>
